<compile_context>
chip_gen: v7x
topology: tpu7x:2x2x1
jax: 0.10.0
libtpu: 0.0.40
codegen_flags: <defaults>
</compile_context>

<pallas_src>
import functools

import jax
import jax.numpy as jnp
from jax.experimental import pallas as pl
from jax.experimental.pallas import tpu as pltpu


# ----------------------------------------------------------------------------
# In-kernel helpers (traced inside the Pallas kernel)
# ----------------------------------------------------------------------------
def _layer_norm(x, gamma, beta, eps):
    mean = jnp.mean(x, axis=-1, keepdims=True)
    xc = x - mean
    var = jnp.mean(xc * xc, axis=-1, keepdims=True)
    return xc * jax.lax.rsqrt(var + eps) * gamma + beta


def _attention(xw_h, src_row, dst_vec, mask, negative_slope):
    """Per-head attention weights.

    xw_h     : (N, H)  this head's projected features (f32)
    src_row  : (1, N)  alpha_src[j] for this head (node index on lanes)
    dst_vec  : (1, H)  this head's att_dst vector
    mask     : (N, N)  additive mask (0 for edges incl. self-loops, -1e9 else)
    """
    a_dst = jnp.sum(xw_h * dst_vec, axis=-1, keepdims=True)          # (N, 1)  VPU/XLU
    e = a_dst + src_row                                               # (N, N)
    e = jnp.maximum(e, negative_slope * e)                            # LeakyReLU
    e = e + mask                                                      # additive mask
    m = jnp.max(e, axis=-1, keepdims=True)
    p = jnp.exp(e - m)
    denom = jnp.sum(p, axis=-1, keepdims=True)
    return p * pl.reciprocal(denom, approx=True)                      # EUP reciprocal


# ----------------------------------------------------------------------------
# Fused forward kernel: gat1 (all heads) + LN1 + ReLU + gat2 + LN2
# ----------------------------------------------------------------------------
def _gat_fused_kernel(x_ref, mask_ref,
                      w1_ref, asb1_ref, ad1_ref, b1_ref, g1_ref, be1_ref,
                      w2_ref, as2_ref, ad2_ref, b2_ref, g2_ref, be2_ref,
                      out_ref, *, heads, hidden, negative_slope, eps):
    f32 = jnp.float32
    bf16 = jnp.bfloat16

    x = x_ref[...]                                                    # (N, F)
    mask = mask_ref[...]                                              # (N, N)

    # ---- GATConv 1: input_dim -> hidden, `heads` heads, concat=True ----
    # Single fused, lane-dense matmul for all heads.
    xw = jnp.dot(x.astype(bf16), w1_ref[...].astype(bf16),
                 preferred_element_type=f32)                          # (N, heads*hid)

    # Source scores for ALL heads in one small matmul:
    #   asb1[h, h*hid + d] = att_src[h, d]  (block-structured, built in wrapper)
    src_rows = jax.lax.dot_general(asb1_ref[...], xw,
                                   (((1,), (1,)), ((), ())),
                                   preferred_element_type=f32)        # (heads, N)
    ad1 = ad1_ref[...]                                                # (heads, hid)

    outs = []
    for h in range(heads):                                            # static unroll
        xw_h = xw[:, h * hidden:(h + 1) * hidden]                     # (N, hid)
        attn = _attention(xw_h, src_rows[h:h + 1, :], ad1[h:h + 1, :],
                          mask, negative_slope)                       # (N, N)
        outs.append(jnp.dot(attn.astype(bf16), xw_h.astype(bf16),
                            preferred_element_type=f32))              # (N, hid)
    h1 = jnp.concatenate(outs, axis=-1) + b1_ref[...]                 # (N, heads*hid)

    # ---- LayerNorm1 + ReLU (f32 statistics) ----
    h1 = _layer_norm(h1, g1_ref[...], be1_ref[...], eps)
    h1 = jnp.maximum(h1, 0.0)
    # TODO(synk): attention dropout / nn.Dropout are train-time only; identity here.

    # ---- GATConv 2: heads*hidden -> emb, 1 head, concat=False ----
    xw2 = jnp.dot(h1.astype(bf16), w2_ref[...].astype(bf16),
                  preferred_element_type=f32)                         # (N, emb)
    src2 = jax.lax.dot_general(as2_ref[...], xw2,
                               (((1,), (1,)), ((), ())),
                               preferred_element_type=f32)            # (1, N)
    attn2 = _attention(xw2, src2, ad2_ref[...], mask, negative_slope)
    h2 = jnp.dot(attn2.astype(bf16), xw2.astype(bf16),
                 preferred_element_type=f32) + b2_ref[...]            # (N, emb)

    # ---- LayerNorm2 ----
    out_ref[...] = _layer_norm(h2, g2_ref[...], be2_ref[...], eps)


# ----------------------------------------------------------------------------
# Wrapper
# ----------------------------------------------------------------------------
def gat_forward(x, adj, p, *, heads, hidden_dim, embedding_dim,
                negative_slope=0.2, ln_eps=1e-5):
    """Mirrors GAT.forward: LN2(gat2(dropout(relu(LN1(gat1(x)))))) (eval mode)."""
    N, F = x.shape
    HD = heads * hidden_dim

    # Additive attention mask, computed once (0 for edges/self-loops, -1e9 else).
    mask = jnp.where(adj > 0, 0.0, -1e9).astype(jnp.float32)

    # Block-structured att_src so every head's source scores come from one matmul.
    eye = jnp.eye(heads, dtype=jnp.float32)
    asb1 = (eye[:, :, None] * p["as1"][None, :, :]).reshape(heads, HD)

    kernel = functools.partial(
        _gat_fused_kernel, heads=heads, hidden=hidden_dim,
        negative_slope=negative_slope, eps=ln_eps)

    def full(shape):
        return pl.BlockSpec(shape, lambda i: (0,) * len(shape))

    args = (
        x, mask,
        p["w1"], asb1, p["ad1"], p["b1"].reshape(1, HD),
        p["ln1_g"].reshape(1, HD), p["ln1_b"].reshape(1, HD),
        p["w2"], p["as2"], p["ad2"], p["b2"].reshape(1, embedding_dim),
        p["ln2_g"].reshape(1, embedding_dim), p["ln2_b"].reshape(1, embedding_dim),
    )

    return pl.pallas_call(
        kernel,
        out_shape=jax.ShapeDtypeStruct((N, embedding_dim), jnp.float32),
        grid=(1,),
        in_specs=[full(a.shape) for a in args],
        out_specs=full((N, embedding_dim)),
        compiler_params=pltpu.CompilerParams(
            dimension_semantics=("arbitrary",)),
    )(*args)


# ----------------------------------------------------------------------------
# Deterministic parameter init (shapes as in GATConv / LayerNorm __init__)
# ----------------------------------------------------------------------------
def init_params(key, input_dim, hidden_dim, embedding_dim, heads):
    ks = jax.random.split(key, 6)

    def lin(k, shape):
        return (jax.random.normal(k, shape, jnp.float32)
                / jnp.sqrt(jnp.float32(shape[0])))

    return dict(
        # GATConv 1: in -> hidden, heads, concat=True
        w1=lin(ks[0], (input_dim, heads * hidden_dim)),
        as1=0.1 * jax.random.normal(ks[1], (heads, hidden_dim), jnp.float32),
        ad1=0.1 * jax.random.normal(ks[2], (heads, hidden_dim), jnp.float32),
        b1=jnp.zeros((heads * hidden_dim,), jnp.float32),
        ln1_g=jnp.ones((heads * hidden_dim,), jnp.float32),
        ln1_b=jnp.zeros((heads * hidden_dim,), jnp.float32),
        # GATConv 2: hidden*heads -> embedding, 1 head, concat=False
        w2=lin(ks[3], (heads * hidden_dim, embedding_dim)),
        as2=0.1 * jax.random.normal(ks[4], (1, embedding_dim), jnp.float32),
        ad2=0.1 * jax.random.normal(ks[5], (1, embedding_dim), jnp.float32),
        b2=jnp.zeros((embedding_dim,), jnp.float32),
        ln2_g=jnp.ones((embedding_dim,), jnp.float32),
        ln2_b=jnp.zeros((embedding_dim,), jnp.float32),
    )


if __name__ == "__main__":
    key = jax.random.PRNGKey(0)
    k_x, k_src, k_dst, k_p = jax.random.split(key, 4)

    N = 64                 # number of graph nodes
    input_dim = 32
    hidden_dim = 32
    embedding_dim = 32
    heads = 4
    num_edges = 256

    x = jax.random.normal(k_x, (N, input_dim), jnp.float32)

    # Synthetic edge_index [2, E] (PyG convention: row 0 = src, row 1 = dst).
    src = jax.random.randint(k_src, (num_edges,), 0, N)
    dst = jax.random.randint(k_dst, (num_edges,), 0, N)
    # Dense adjacency mask adj[dst, src] = 1; duplicates collapse (simple graph).
    adj = jnp.zeros((N, N), jnp.float32).at[dst, src].set(1.0)
    adj = jnp.maximum(adj, jnp.eye(N, dtype=jnp.float32))   # add self-loops

    params = init_params(k_p, input_dim, hidden_dim, embedding_dim, heads)

    out = gat_forward(x, adj, params, heads=heads,
                      hidden_dim=hidden_dim, embedding_dim=embedding_dim)
    out = jax.block_until_ready(out)

    assert out.shape == (N, embedding_dim)
    assert out.dtype == jnp.float32
    assert bool(jnp.all(jnp.isfinite(out)))
    print("KERNEL_OK")
</pallas_src>

<mosaic_0001>
module attributes {stable_mosaic.version = 11 : i64} {
  func.func @_gat_fused_kernel(%arg0: i32, %arg1: memref<64x32xf32, #tpu.memory_space<vmem>>, %arg2: memref<64x64xf32, #tpu.memory_space<vmem>>, %arg3: memref<32x128xf32, #tpu.memory_space<vmem>>, %arg4: memref<4x128xf32, #tpu.memory_space<vmem>>, %arg5: memref<4x32xf32, #tpu.memory_space<vmem>>, %arg6: memref<1x128xf32, #tpu.memory_space<vmem>>, %arg7: memref<1x128xf32, #tpu.memory_space<vmem>>, %arg8: memref<1x128xf32, #tpu.memory_space<vmem>>, %arg9: memref<128x32xf32, #tpu.memory_space<vmem>>, %arg10: memref<1x32xf32, #tpu.memory_space<vmem>>, %arg11: memref<1x32xf32, #tpu.memory_space<vmem>>, %arg12: memref<1x32xf32, #tpu.memory_space<vmem>>, %arg13: memref<1x32xf32, #tpu.memory_space<vmem>>, %arg14: memref<1x32xf32, #tpu.memory_space<vmem>>, %arg15: memref<64x32xf32, #tpu.memory_space<vmem>>) attributes {dimension_semantics = [#tpu.dimension_semantics<arbitrary>], iteration_bounds = array<i64: 1>, scalar_prefetch = 0 : i64, scratch_operands = 0 : i64, tpu.core_type = #tpu.core_type<tc>, window_params = [{pipeline_mode = #tpu.pipeline_mode<synchronous>, transform_indices = @transform_0, window_bounds = array<i64: 64, 32>}, {pipeline_mode = #tpu.pipeline_mode<synchronous>, transform_indices = @transform_1, window_bounds = array<i64: 64, 64>}, {pipeline_mode = #tpu.pipeline_mode<synchronous>, transform_indices = @transform_2, window_bounds = array<i64: 32, 128>}, {pipeline_mode = #tpu.pipeline_mode<synchronous>, transform_indices = @transform_3, window_bounds = array<i64: 4, 128>}, {pipeline_mode = #tpu.pipeline_mode<synchronous>, transform_indices = @transform_4, window_bounds = array<i64: 4, 32>}, {pipeline_mode = #tpu.pipeline_mode<synchronous>, transform_indices = @transform_5, window_bounds = array<i64: 1, 128>}, {pipeline_mode = #tpu.pipeline_mode<synchronous>, transform_indices = @transform_6, window_bounds = array<i64: 1, 128>}, {pipeline_mode = #tpu.pipeline_mode<synchronous>, transform_indices = @transform_7, window_bounds = array<i64: 1, 128>}, {pipeline_mode = #tpu.pipeline_mode<synchronous>, transform_indices = @transform_8, window_bounds = array<i64: 128, 32>}, {pipeline_mode = #tpu.pipeline_mode<synchronous>, transform_indices = @transform_9, window_bounds = array<i64: 1, 32>}, {pipeline_mode = #tpu.pipeline_mode<synchronous>, transform_indices = @transform_10, window_bounds = array<i64: 1, 32>}, {pipeline_mode = #tpu.pipeline_mode<synchronous>, transform_indices = @transform_11, window_bounds = array<i64: 1, 32>}, {pipeline_mode = #tpu.pipeline_mode<synchronous>, transform_indices = @transform_12, window_bounds = array<i64: 1, 32>}, {pipeline_mode = #tpu.pipeline_mode<synchronous>, transform_indices = @transform_13, window_bounds = array<i64: 1, 32>}, {pipeline_mode = #tpu.pipeline_mode<synchronous>, transform_indices = @transform_14, window_bounds = array<i64: 64, 32>}]} {
    %c0 = arith.constant 0 : index
    %c0_0 = arith.constant 0 : index
    %0 = vector.load %arg1[%c0, %c0_0] : memref<64x32xf32, #tpu.memory_space<vmem>>, vector<64x32xf32>
    %c0_1 = arith.constant 0 : index
    %c0_2 = arith.constant 0 : index
    %1 = vector.load %arg2[%c0_1, %c0_2] : memref<64x64xf32, #tpu.memory_space<vmem>>, vector<64x64xf32>
    %2 = arith.truncf %0 : vector<64x32xf32> to vector<64x32xbf16>
    %c0_3 = arith.constant 0 : index
    %c0_4 = arith.constant 0 : index
    %3 = vector.load %arg3[%c0_3, %c0_4] : memref<32x128xf32, #tpu.memory_space<vmem>>, vector<32x128xf32>
    %4 = arith.truncf %3 : vector<32x128xf32> to vector<32x128xbf16>
    %cst = arith.constant dense<0.000000e+00> : vector<64x128xf32>
    %5 = tpu.matmul %2, %4, %cst {dimension_numbers = #tpu.dot_dimension_numbers<[1], [0], [0], [1], [0, 0, 1, 1], [], []>} : vector<64x32xbf16>, vector<32x128xbf16>, vector<64x128xf32> -> vector<64x128xf32>
    %c0_5 = arith.constant 0 : index
    %c0_6 = arith.constant 0 : index
    %6 = vector.load %arg4[%c0_5, %c0_6] : memref<4x128xf32, #tpu.memory_space<vmem>>, vector<4x128xf32>
    %cst_7 = arith.constant dense<0.000000e+00> : vector<4x64xf32>
    %7 = tpu.matmul %6, %5, %cst_7 {dimension_numbers = #tpu.dot_dimension_numbers<[1], [1], [0], [0], [0, 0, 1, 0], [], []>} : vector<4x128xf32>, vector<64x128xf32>, vector<4x64xf32> -> vector<4x64xf32>
    %c0_8 = arith.constant 0 : index
    %c0_9 = arith.constant 0 : index
    %8 = vector.load %arg5[%c0_8, %c0_9] : memref<4x32xf32, #tpu.memory_space<vmem>>, vector<4x32xf32>
    %9 = vector.extract_strided_slice %5 {offsets = [0, 0], sizes = [64, 32], strides = [1, 1]} : vector<64x128xf32> to vector<64x32xf32>
    %10 = vector.extract_strided_slice %7 {offsets = [0, 0], sizes = [1, 64], strides = [1, 1]} : vector<4x64xf32> to vector<1x64xf32>
    %11 = vector.extract_strided_slice %8 {offsets = [0, 0], sizes = [1, 32], strides = [1, 1]} : vector<4x32xf32> to vector<1x32xf32>
    %12 = vector.broadcast %11 : vector<1x32xf32> to vector<64x32xf32>
    %13 = arith.mulf %9, %12 : vector<64x32xf32>
    %cst_10 = arith.constant dense<0.000000e+00> : vector<64xf32>
    %14 = vector.multi_reduction <add>, %13, %cst_10 [1] : vector<64x32xf32> to vector<64xf32>
    %15 = vector.shape_cast %14 : vector<64xf32> to vector<64x1xf32>
    %16 = vector.broadcast %15 : vector<64x1xf32> to vector<64x64xf32>
    %17 = vector.broadcast %10 : vector<1x64xf32> to vector<64x64xf32>
    %18 = arith.addf %16, %17 : vector<64x64xf32>
    %cst_11 = arith.constant 2.000000e-01 : f32
    %19 = vector.broadcast %cst_11 : f32 to vector<64x64xf32>
    %20 = arith.mulf %19, %18 : vector<64x64xf32>
    %21 = arith.maximumf %18, %20 : vector<64x64xf32>
    %22 = arith.addf %21, %1 : vector<64x64xf32>
    %cst_12 = arith.constant dense<0xFF800000> : vector<64xf32>
    %23 = vector.multi_reduction <maximumf>, %22, %cst_12 [1] : vector<64x64xf32> to vector<64xf32>
    %24 = vector.shape_cast %23 : vector<64xf32> to vector<64x1xf32>
    %25 = vector.broadcast %24 : vector<64x1xf32> to vector<64x64xf32>
    %26 = arith.subf %22, %25 : vector<64x64xf32>
    %27 = math.exp %26 : vector<64x64xf32>
    %cst_13 = arith.constant dense<0.000000e+00> : vector<64xf32>
    %28 = vector.multi_reduction <add>, %27, %cst_13 [1] : vector<64x64xf32> to vector<64xf32>
    %29 = vector.shape_cast %28 : vector<64xf32> to vector<64x1xf32>
    %30 = tpu.reciprocal %29 {approx = true} : vector<64x1xf32> -> vector<64x1xf32>
    %31 = vector.broadcast %30 : vector<64x1xf32> to vector<64x64xf32>
    %32 = arith.mulf %27, %31 : vector<64x64xf32>
    %33 = arith.truncf %32 : vector<64x64xf32> to vector<64x64xbf16>
    %34 = arith.truncf %9 : vector<64x32xf32> to vector<64x32xbf16>
    %cst_14 = arith.constant dense<0.000000e+00> : vector<64x32xf32>
    %35 = tpu.matmul %33, %34, %cst_14 {dimension_numbers = #tpu.dot_dimension_numbers<[1], [0], [0], [1], [0, 0, 1, 1], [], []>} : vector<64x64xbf16>, vector<64x32xbf16>, vector<64x32xf32> -> vector<64x32xf32>
    %36 = vector.extract_strided_slice %5 {offsets = [0, 32], sizes = [64, 32], strides = [1, 1]} : vector<64x128xf32> to vector<64x32xf32>
    %37 = vector.extract_strided_slice %7 {offsets = [1, 0], sizes = [1, 64], strides = [1, 1]} : vector<4x64xf32> to vector<1x64xf32>
    %38 = vector.extract_strided_slice %8 {offsets = [1, 0], sizes = [1, 32], strides = [1, 1]} : vector<4x32xf32> to vector<1x32xf32>
    %39 = vector.broadcast %38 : vector<1x32xf32> to vector<64x32xf32>
    %40 = arith.mulf %36, %39 : vector<64x32xf32>
    %cst_15 = arith.constant dense<0.000000e+00> : vector<64xf32>
    %41 = vector.multi_reduction <add>, %40, %cst_15 [1] : vector<64x32xf32> to vector<64xf32>
    %42 = vector.shape_cast %41 : vector<64xf32> to vector<64x1xf32>
    %43 = vector.broadcast %42 : vector<64x1xf32> to vector<64x64xf32>
    %44 = vector.broadcast %37 : vector<1x64xf32> to vector<64x64xf32>
    %45 = arith.addf %43, %44 : vector<64x64xf32>
    %cst_16 = arith.constant 2.000000e-01 : f32
    %46 = vector.broadcast %cst_16 : f32 to vector<64x64xf32>
    %47 = arith.mulf %46, %45 : vector<64x64xf32>
    %48 = arith.maximumf %45, %47 : vector<64x64xf32>
    %49 = arith.addf %48, %1 : vector<64x64xf32>
    %cst_17 = arith.constant dense<0xFF800000> : vector<64xf32>
    %50 = vector.multi_reduction <maximumf>, %49, %cst_17 [1] : vector<64x64xf32> to vector<64xf32>
    %51 = vector.shape_cast %50 : vector<64xf32> to vector<64x1xf32>
    %52 = vector.broadcast %51 : vector<64x1xf32> to vector<64x64xf32>
    %53 = arith.subf %49, %52 : vector<64x64xf32>
    %54 = math.exp %53 : vector<64x64xf32>
    %cst_18 = arith.constant dense<0.000000e+00> : vector<64xf32>
    %55 = vector.multi_reduction <add>, %54, %cst_18 [1] : vector<64x64xf32> to vector<64xf32>
    %56 = vector.shape_cast %55 : vector<64xf32> to vector<64x1xf32>
    %57 = tpu.reciprocal %56 {approx = true} : vector<64x1xf32> -> vector<64x1xf32>
    %58 = vector.broadcast %57 : vector<64x1xf32> to vector<64x64xf32>
    %59 = arith.mulf %54, %58 : vector<64x64xf32>
    %60 = arith.truncf %59 : vector<64x64xf32> to vector<64x64xbf16>
    %61 = arith.truncf %36 : vector<64x32xf32> to vector<64x32xbf16>
    %cst_19 = arith.constant dense<0.000000e+00> : vector<64x32xf32>
    %62 = tpu.matmul %60, %61, %cst_19 {dimension_numbers = #tpu.dot_dimension_numbers<[1], [0], [0], [1], [0, 0, 1, 1], [], []>} : vector<64x64xbf16>, vector<64x32xbf16>, vector<64x32xf32> -> vector<64x32xf32>
    %63 = vector.extract_strided_slice %5 {offsets = [0, 64], sizes = [64, 32], strides = [1, 1]} : vector<64x128xf32> to vector<64x32xf32>
    %64 = vector.extract_strided_slice %7 {offsets = [2, 0], sizes = [1, 64], strides = [1, 1]} : vector<4x64xf32> to vector<1x64xf32>
    %65 = vector.extract_strided_slice %8 {offsets = [2, 0], sizes = [1, 32], strides = [1, 1]} : vector<4x32xf32> to vector<1x32xf32>
    %66 = vector.broadcast %65 : vector<1x32xf32> to vector<64x32xf32>
    %67 = arith.mulf %63, %66 : vector<64x32xf32>
    %cst_20 = arith.constant dense<0.000000e+00> : vector<64xf32>
    %68 = vector.multi_reduction <add>, %67, %cst_20 [1] : vector<64x32xf32> to vector<64xf32>
    %69 = vector.shape_cast %68 : vector<64xf32> to vector<64x1xf32>
    %70 = vector.broadcast %69 : vector<64x1xf32> to vector<64x64xf32>
    %71 = vector.broadcast %64 : vector<1x64xf32> to vector<64x64xf32>
    %72 = arith.addf %70, %71 : vector<64x64xf32>
    %cst_21 = arith.constant 2.000000e-01 : f32
    %73 = vector.broadcast %cst_21 : f32 to vector<64x64xf32>
    %74 = arith.mulf %73, %72 : vector<64x64xf32>
    %75 = arith.maximumf %72, %74 : vector<64x64xf32>
    %76 = arith.addf %75, %1 : vector<64x64xf32>
    %cst_22 = arith.constant dense<0xFF800000> : vector<64xf32>
    %77 = vector.multi_reduction <maximumf>, %76, %cst_22 [1] : vector<64x64xf32> to vector<64xf32>
    %78 = vector.shape_cast %77 : vector<64xf32> to vector<64x1xf32>
    %79 = vector.broadcast %78 : vector<64x1xf32> to vector<64x64xf32>
    %80 = arith.subf %76, %79 : vector<64x64xf32>
    %81 = math.exp %80 : vector<64x64xf32>
    %cst_23 = arith.constant dense<0.000000e+00> : vector<64xf32>
    %82 = vector.multi_reduction <add>, %81, %cst_23 [1] : vector<64x64xf32> to vector<64xf32>
    %83 = vector.shape_cast %82 : vector<64xf32> to vector<64x1xf32>
    %84 = tpu.reciprocal %83 {approx = true} : vector<64x1xf32> -> vector<64x1xf32>
    %85 = vector.broadcast %84 : vector<64x1xf32> to vector<64x64xf32>
    %86 = arith.mulf %81, %85 : vector<64x64xf32>
    %87 = arith.truncf %86 : vector<64x64xf32> to vector<64x64xbf16>
    %88 = arith.truncf %63 : vector<64x32xf32> to vector<64x32xbf16>
    %cst_24 = arith.constant dense<0.000000e+00> : vector<64x32xf32>
    %89 = tpu.matmul %87, %88, %cst_24 {dimension_numbers = #tpu.dot_dimension_numbers<[1], [0], [0], [1], [0, 0, 1, 1], [], []>} : vector<64x64xbf16>, vector<64x32xbf16>, vector<64x32xf32> -> vector<64x32xf32>
    %90 = vector.extract_strided_slice %5 {offsets = [0, 96], sizes = [64, 32], strides = [1, 1]} : vector<64x128xf32> to vector<64x32xf32>
    %91 = vector.extract_strided_slice %7 {offsets = [3, 0], sizes = [1, 64], strides = [1, 1]} : vector<4x64xf32> to vector<1x64xf32>
    %92 = vector.extract_strided_slice %8 {offsets = [3, 0], sizes = [1, 32], strides = [1, 1]} : vector<4x32xf32> to vector<1x32xf32>
    %93 = vector.broadcast %92 : vector<1x32xf32> to vector<64x32xf32>
    %94 = arith.mulf %90, %93 : vector<64x32xf32>
    %cst_25 = arith.constant dense<0.000000e+00> : vector<64xf32>
    %95 = vector.multi_reduction <add>, %94, %cst_25 [1] : vector<64x32xf32> to vector<64xf32>
    %96 = vector.shape_cast %95 : vector<64xf32> to vector<64x1xf32>
    %97 = vector.broadcast %96 : vector<64x1xf32> to vector<64x64xf32>
    %98 = vector.broadcast %91 : vector<1x64xf32> to vector<64x64xf32>
    %99 = arith.addf %97, %98 : vector<64x64xf32>
    %cst_26 = arith.constant 2.000000e-01 : f32
    %100 = vector.broadcast %cst_26 : f32 to vector<64x64xf32>
    %101 = arith.mulf %100, %99 : vector<64x64xf32>
    %102 = arith.maximumf %99, %101 : vector<64x64xf32>
    %103 = arith.addf %102, %1 : vector<64x64xf32>
    %cst_27 = arith.constant dense<0xFF800000> : vector<64xf32>
    %104 = vector.multi_reduction <maximumf>, %103, %cst_27 [1] : vector<64x64xf32> to vector<64xf32>
    %105 = vector.shape_cast %104 : vector<64xf32> to vector<64x1xf32>
    %106 = vector.broadcast %105 : vector<64x1xf32> to vector<64x64xf32>
    %107 = arith.subf %103, %106 : vector<64x64xf32>
    %108 = math.exp %107 : vector<64x64xf32>
    %cst_28 = arith.constant dense<0.000000e+00> : vector<64xf32>
    %109 = vector.multi_reduction <add>, %108, %cst_28 [1] : vector<64x64xf32> to vector<64xf32>
    %110 = vector.shape_cast %109 : vector<64xf32> to vector<64x1xf32>
    %111 = tpu.reciprocal %110 {approx = true} : vector<64x1xf32> -> vector<64x1xf32>
    %112 = vector.broadcast %111 : vector<64x1xf32> to vector<64x64xf32>
    %113 = arith.mulf %108, %112 : vector<64x64xf32>
    %114 = arith.truncf %113 : vector<64x64xf32> to vector<64x64xbf16>
    %115 = arith.truncf %90 : vector<64x32xf32> to vector<64x32xbf16>
    %cst_29 = arith.constant dense<0.000000e+00> : vector<64x32xf32>
    %116 = tpu.matmul %114, %115, %cst_29 {dimension_numbers = #tpu.dot_dimension_numbers<[1], [0], [0], [1], [0, 0, 1, 1], [], []>} : vector<64x64xbf16>, vector<64x32xbf16>, vector<64x32xf32> -> vector<64x32xf32>
    %117 = tpu.concatenate %35, %62, %89, %116 in 1 : vector<64x32xf32>, vector<64x32xf32>, vector<64x32xf32>, vector<64x32xf32> -> vector<64x128xf32>
    %c0_30 = arith.constant 0 : index
    %c0_31 = arith.constant 0 : index
    %118 = vector.load %arg6[%c0_30, %c0_31] : memref<1x128xf32, #tpu.memory_space<vmem>>, vector<1x128xf32>
    %119 = vector.broadcast %118 : vector<1x128xf32> to vector<64x128xf32>
    %120 = arith.addf %117, %119 : vector<64x128xf32>
    %c0_32 = arith.constant 0 : index
    %c0_33 = arith.constant 0 : index
    %121 = vector.load %arg7[%c0_32, %c0_33] : memref<1x128xf32, #tpu.memory_space<vmem>>, vector<1x128xf32>
    %c0_34 = arith.constant 0 : index
    %c0_35 = arith.constant 0 : index
    %122 = vector.load %arg8[%c0_34, %c0_35] : memref<1x128xf32, #tpu.memory_space<vmem>>, vector<1x128xf32>
    %cst_36 = arith.constant dense<0.000000e+00> : vector<64xf32>
    %123 = vector.multi_reduction <add>, %120, %cst_36 [1] : vector<64x128xf32> to vector<64xf32>
    %124 = vector.shape_cast %123 : vector<64xf32> to vector<64x1xf32>
    %cst_37 = arith.constant 1.280000e+02 : f32
    %125 = vector.broadcast %cst_37 : f32 to vector<64x1xf32>
    %126 = arith.divf %124, %125 : vector<64x1xf32>
    %127 = vector.broadcast %126 : vector<64x1xf32> to vector<64x128xf32>
    %128 = arith.subf %120, %127 : vector<64x128xf32>
    %129 = arith.mulf %128, %128 : vector<64x128xf32>
    %cst_38 = arith.constant dense<0.000000e+00> : vector<64xf32>
    %130 = vector.multi_reduction <add>, %129, %cst_38 [1] : vector<64x128xf32> to vector<64xf32>
    %131 = vector.shape_cast %130 : vector<64xf32> to vector<64x1xf32>
    %cst_39 = arith.constant 1.280000e+02 : f32
    %132 = vector.broadcast %cst_39 : f32 to vector<64x1xf32>
    %133 = arith.divf %131, %132 : vector<64x1xf32>
    %cst_40 = arith.constant 9.99999974E-6 : f32
    %134 = vector.broadcast %cst_40 : f32 to vector<64x1xf32>
    %135 = arith.addf %133, %134 : vector<64x1xf32>
    %136 = math.rsqrt %135 : vector<64x1xf32>
    %137 = vector.broadcast %136 : vector<64x1xf32> to vector<64x128xf32>
    %138 = arith.mulf %128, %137 : vector<64x128xf32>
    %139 = vector.broadcast %121 : vector<1x128xf32> to vector<64x128xf32>
    %140 = arith.mulf %138, %139 : vector<64x128xf32>
    %141 = vector.broadcast %122 : vector<1x128xf32> to vector<64x128xf32>
    %142 = arith.addf %140, %141 : vector<64x128xf32>
    %cst_41 = arith.constant 0.000000e+00 : f32
    %143 = vector.broadcast %cst_41 : f32 to vector<64x128xf32>
    %144 = arith.maximumf %142, %143 : vector<64x128xf32>
    %145 = arith.truncf %144 : vector<64x128xf32> to vector<64x128xbf16>
    %c0_42 = arith.constant 0 : index
    %c0_43 = arith.constant 0 : index
    %146 = vector.load %arg9[%c0_42, %c0_43] : memref<128x32xf32, #tpu.memory_space<vmem>>, vector<128x32xf32>
    %147 = arith.truncf %146 : vector<128x32xf32> to vector<128x32xbf16>
    %cst_44 = arith.constant dense<0.000000e+00> : vector<64x32xf32>
    %148 = tpu.matmul %145, %147, %cst_44 {dimension_numbers = #tpu.dot_dimension_numbers<[1], [0], [0], [1], [0, 0, 1, 1], [], []>} : vector<64x128xbf16>, vector<128x32xbf16>, vector<64x32xf32> -> vector<64x32xf32>
    %c0_45 = arith.constant 0 : index
    %c0_46 = arith.constant 0 : index
    %149 = vector.load %arg10[%c0_45, %c0_46] : memref<1x32xf32, #tpu.memory_space<vmem>>, vector<1x32xf32>
    %cst_47 = arith.constant dense<0.000000e+00> : vector<1x64xf32>
    %150 = tpu.matmul %149, %148, %cst_47 {dimension_numbers = #tpu.dot_dimension_numbers<[1], [1], [0], [0], [0, 0, 1, 0], [], []>} : vector<1x32xf32>, vector<64x32xf32>, vector<1x64xf32> -> vector<1x64xf32>
    %c0_48 = arith.constant 0 : index
    %c0_49 = arith.constant 0 : index
    %151 = vector.load %arg11[%c0_48, %c0_49] : memref<1x32xf32, #tpu.memory_space<vmem>>, vector<1x32xf32>
    %152 = vector.broadcast %151 : vector<1x32xf32> to vector<64x32xf32>
    %153 = arith.mulf %148, %152 : vector<64x32xf32>
    %cst_50 = arith.constant dense<0.000000e+00> : vector<64xf32>
    %154 = vector.multi_reduction <add>, %153, %cst_50 [1] : vector<64x32xf32> to vector<64xf32>
    %155 = vector.shape_cast %154 : vector<64xf32> to vector<64x1xf32>
    %156 = vector.broadcast %155 : vector<64x1xf32> to vector<64x64xf32>
    %157 = vector.broadcast %150 : vector<1x64xf32> to vector<64x64xf32>
    %158 = arith.addf %156, %157 : vector<64x64xf32>
    %cst_51 = arith.constant 2.000000e-01 : f32
    %159 = vector.broadcast %cst_51 : f32 to vector<64x64xf32>
    %160 = arith.mulf %159, %158 : vector<64x64xf32>
    %161 = arith.maximumf %158, %160 : vector<64x64xf32>
    %162 = arith.addf %161, %1 : vector<64x64xf32>
    %cst_52 = arith.constant dense<0xFF800000> : vector<64xf32>
    %163 = vector.multi_reduction <maximumf>, %162, %cst_52 [1] : vector<64x64xf32> to vector<64xf32>
    %164 = vector.shape_cast %163 : vector<64xf32> to vector<64x1xf32>
    %165 = vector.broadcast %164 : vector<64x1xf32> to vector<64x64xf32>
    %166 = arith.subf %162, %165 : vector<64x64xf32>
    %167 = math.exp %166 : vector<64x64xf32>
    %cst_53 = arith.constant dense<0.000000e+00> : vector<64xf32>
    %168 = vector.multi_reduction <add>, %167, %cst_53 [1] : vector<64x64xf32> to vector<64xf32>
    %169 = vector.shape_cast %168 : vector<64xf32> to vector<64x1xf32>
    %170 = tpu.reciprocal %169 {approx = true} : vector<64x1xf32> -> vector<64x1xf32>
    %171 = vector.broadcast %170 : vector<64x1xf32> to vector<64x64xf32>
    %172 = arith.mulf %167, %171 : vector<64x64xf32>
    %173 = arith.truncf %172 : vector<64x64xf32> to vector<64x64xbf16>
    %174 = arith.truncf %148 : vector<64x32xf32> to vector<64x32xbf16>
    %cst_54 = arith.constant dense<0.000000e+00> : vector<64x32xf32>
    %175 = tpu.matmul %173, %174, %cst_54 {dimension_numbers = #tpu.dot_dimension_numbers<[1], [0], [0], [1], [0, 0, 1, 1], [], []>} : vector<64x64xbf16>, vector<64x32xbf16>, vector<64x32xf32> -> vector<64x32xf32>
    %c0_55 = arith.constant 0 : index
    %c0_56 = arith.constant 0 : index
    %176 = vector.load %arg12[%c0_55, %c0_56] : memref<1x32xf32, #tpu.memory_space<vmem>>, vector<1x32xf32>
    %177 = vector.broadcast %176 : vector<1x32xf32> to vector<64x32xf32>
    %178 = arith.addf %175, %177 : vector<64x32xf32>
    %c0_57 = arith.constant 0 : index
    %c0_58 = arith.constant 0 : index
    %179 = vector.load %arg13[%c0_57, %c0_58] : memref<1x32xf32, #tpu.memory_space<vmem>>, vector<1x32xf32>
    %c0_59 = arith.constant 0 : index
    %c0_60 = arith.constant 0 : index
    %180 = vector.load %arg14[%c0_59, %c0_60] : memref<1x32xf32, #tpu.memory_space<vmem>>, vector<1x32xf32>
    %cst_61 = arith.constant dense<0.000000e+00> : vector<64xf32>
    %181 = vector.multi_reduction <add>, %178, %cst_61 [1] : vector<64x32xf32> to vector<64xf32>
    %182 = vector.shape_cast %181 : vector<64xf32> to vector<64x1xf32>
    %cst_62 = arith.constant 3.200000e+01 : f32
    %183 = vector.broadcast %cst_62 : f32 to vector<64x1xf32>
    %184 = arith.divf %182, %183 : vector<64x1xf32>
    %185 = vector.broadcast %184 : vector<64x1xf32> to vector<64x32xf32>
    %186 = arith.subf %178, %185 : vector<64x32xf32>
    %187 = arith.mulf %186, %186 : vector<64x32xf32>
    %cst_63 = arith.constant dense<0.000000e+00> : vector<64xf32>
    %188 = vector.multi_reduction <add>, %187, %cst_63 [1] : vector<64x32xf32> to vector<64xf32>
    %189 = vector.shape_cast %188 : vector<64xf32> to vector<64x1xf32>
    %cst_64 = arith.constant 3.200000e+01 : f32
    %190 = vector.broadcast %cst_64 : f32 to vector<64x1xf32>
    %191 = arith.divf %189, %190 : vector<64x1xf32>
    %cst_65 = arith.constant 9.99999974E-6 : f32
    %192 = vector.broadcast %cst_65 : f32 to vector<64x1xf32>
    %193 = arith.addf %191, %192 : vector<64x1xf32>
    %194 = math.rsqrt %193 : vector<64x1xf32>
    %195 = vector.broadcast %194 : vector<64x1xf32> to vector<64x32xf32>
    %196 = arith.mulf %186, %195 : vector<64x32xf32>
    %197 = vector.broadcast %179 : vector<1x32xf32> to vector<64x32xf32>
    %198 = arith.mulf %196, %197 : vector<64x32xf32>
    %199 = vector.broadcast %180 : vector<1x32xf32> to vector<64x32xf32>
    %200 = arith.addf %198, %199 : vector<64x32xf32>
    %c0_66 = arith.constant 0 : index
    %c0_67 = arith.constant 0 : index
    %201 = vector.load %arg15[%c0_66, %c0_67] : memref<64x32xf32, #tpu.memory_space<vmem>>, vector<64x32xf32>
    tpu.vector_store %arg15[%c0_66, %c0_67], %200 {strides = array<i32>} : memref<64x32xf32, #tpu.memory_space<vmem>>, vector<64x32xf32>,
    return
  }
  func.func @transform_0(%arg0: i32) -> (i32, i32) {
    %c0_i32 = arith.constant 0 : i32
    %c0_i32_0 = arith.constant 0 : i32
    %c0_i32_1 = arith.constant 0 : i32
    return %c0_i32, %c0_i32_0 : i32, i32
  }
  func.func @transform_1(%arg0: i32) -> (i32, i32) {
    %c0_i32 = arith.constant 0 : i32
    %c0_i32_0 = arith.constant 0 : i32
    %c0_i32_1 = arith.constant 0 : i32
    return %c0_i32, %c0_i32_0 : i32, i32
  }
  func.func @transform_2(%arg0: i32) -> (i32, i32) {
    %c0_i32 = arith.constant 0 : i32
    %c0_i32_0 = arith.constant 0 : i32
    %c0_i32_1 = arith.constant 0 : i32
    return %c0_i32, %c0_i32_0 : i32, i32
  }
  func.func @transform_3(%arg0: i32) -> (i32, i32) {
    %c0_i32 = arith.constant 0 : i32
    %c0_i32_0 = arith.constant 0 : i32
    %c0_i32_1 = arith.constant 0 : i32
    return %c0_i32, %c0_i32_0 : i32, i32
  }
  func.func @transform_4(%arg0: i32) -> (i32, i32) {
    %c0_i32 = arith.constant 0 : i32
    %c0_i32_0 = arith.constant 0 : i32
    %c0_i32_1 = arith.constant 0 : i32
    return %c0_i32, %c0_i32_0 : i32, i32
  }
  func.func @transform_5(%arg0: i32) -> (i32, i32) {
    %c0_i32 = arith.constant 0 : i32
    %c0_i32_0 = arith.constant 0 : i32
    %c0_i32_1 = arith.constant 0 : i32
    return %c0_i32, %c0_i32_0 : i32, i32
  }
  func.func @transform_6(%arg0: i32) -> (i32, i32) {
    %c0_i32 = arith.constant 0 : i32
    %c0_i32_0 = arith.constant 0 : i32
    %c0_i32_1 = arith.constant 0 : i32
    return %c0_i32, %c0_i32_0 : i32, i32
  }
  func.func @transform_7(%arg0: i32) -> (i32, i32) {
    %c0_i32 = arith.constant 0 : i32
    %c0_i32_0 = arith.constant 0 : i32
    %c0_i32_1 = arith.constant 0 : i32
    return %c0_i32, %c0_i32_0 : i32, i32
  }
  func.func @transform_8(%arg0: i32) -> (i32, i32) {
    %c0_i32 = arith.constant 0 : i32
    %c0_i32_0 = arith.constant 0 : i32
    %c0_i32_1 = arith.constant 0 : i32
    return %c0_i32, %c0_i32_0 : i32, i32
  }
  func.func @transform_9(%arg0: i32) -> (i32, i32) {
    %c0_i32 = arith.constant 0 : i32
    %c0_i32_0 = arith.constant 0 : i32
    %c0_i32_1 = arith.constant 0 : i32
    return %c0_i32, %c0_i32_0 : i32, i32
  }
  func.func @transform_10(%arg0: i32) -> (i32, i32) {
    %c0_i32 = arith.constant 0 : i32
    %c0_i32_0 = arith.constant 0 : i32
    %c0_i32_1 = arith.constant 0 : i32
    return %c0_i32, %c0_i32_0 : i32, i32
  }
  func.func @transform_11(%arg0: i32) -> (i32, i32) {
    %c0_i32 = arith.constant 0 : i32
    %c0_i32_0 = arith.constant 0 : i32
    %c0_i32_1 = arith.constant 0 : i32
    return %c0_i32, %c0_i32_0 : i32, i32
  }
  func.func @transform_12(%arg0: i32) -> (i32, i32) {
    %c0_i32 = arith.constant 0 : i32
    %c0_i32_0 = arith.constant 0 : i32
    %c0_i32_1 = arith.constant 0 : i32
    return %c0_i32, %c0_i32_0 : i32, i32
  }
  func.func @transform_13(%arg0: i32) -> (i32, i32) {
    %c0_i32 = arith.constant 0 : i32
    %c0_i32_0 = arith.constant 0 : i32
    %c0_i32_1 = arith.constant 0 : i32
    return %c0_i32, %c0_i32_0 : i32, i32
  }
  func.func @transform_14(%arg0: i32) -> (i32, i32) {
    %c0_i32 = arith.constant 0 : i32
    %c0_i32_0 = arith.constant 0 : i32
    %c0_i32_1 = arith.constant 0 : i32
    return %c0_i32, %c0_i32_0 : i32, i32
  }
}

</mosaic_0001>

<llo_original>
// kernel: tpu_custom_call.1
$region0: #{tpu_custom_call.1}
  #allocation0 [shape = 'u32[]', space=smem, size = 0x4, offset = 0x4, fixed_abs, tag = 'smem constant byte address 0x4 - core index']
  #allocation1 [shape = 'u32[144,128]{1,0:T(1,128)}', space=vmem, size = 0x12000, scoped, tag = 'internal scratch']
  %s0 = inlined_call_operand.vmem [shape: f32[64,32], index: 0, kind: input, shape index: {}]
  %s1 = inlined_call_operand.vmem [shape: f32[64,64], index: 1, kind: input, shape index: {}]
  %s2 = inlined_call_operand.vmem [shape: f32[32,128], index: 2, kind: input, shape index: {}]
  %s3 = inlined_call_operand.vmem [shape: f32[4,128], index: 3, kind: input, shape index: {}]
  %s4 = inlined_call_operand.vmem [shape: f32[4,32], index: 4, kind: input, shape index: {}]
  %s5 = inlined_call_operand.vmem [shape: f32[1,128], index: 5, kind: input, shape index: {}]
  %s6 = inlined_call_operand.vmem [shape: f32[1,128], index: 6, kind: input, shape index: {}]
  %s7 = inlined_call_operand.vmem [shape: f32[1,128], index: 7, kind: input, shape index: {}]
  %s8 = inlined_call_operand.vmem [shape: f32[128,32], index: 8, kind: input, shape index: {}]
  %s9 = inlined_call_operand.vmem [shape: f32[1,32], index: 9, kind: input, shape index: {}]
  %s10 = inlined_call_operand.vmem [shape: f32[1,32], index: 10, kind: input, shape index: {}]
  %s11 = inlined_call_operand.vmem [shape: f32[1,32], index: 11, kind: input, shape index: {}]
  %s12 = inlined_call_operand.vmem [shape: f32[1,32], index: 12, kind: input, shape index: {}]
  %s13 = inlined_call_operand.vmem [shape: f32[1,32], index: 13, kind: input, shape index: {}]
  %s14 = inlined_call_operand.vmem [shape: f32[64,32], index: 14, kind: output, shape index: {}]
  %s15 = sld [smem:[#allocation0]]
  $region66: #{tpu_custom_call.1} parent=0
    _
  %s17 = ssub.s32 1, %s15
  %s18 = scalar_select 0, %s17, %s15
  // Predicated region
  $region2: #{tpu_custom_call.1} parent=0 // pred_check
    _
  $region3: #{tpu_custom_call.1} parent=0 // pred_check_branch
    %20 = sbr.rel (0) target = $region5
  $region4: #{tpu_custom_call.1} parent=0 // pred_region
    _
  $region5: #{tpu_custom_call.1} parent=0 // pred_fallthru
    _
  // Predicated region
  $region6: #{tpu_custom_call.1} parent=0 // pred_check
    _
  $region7: #{tpu_custom_call.1} parent=0 // pred_check_branch
    %22 = sbr.rel (0) target = $region9
  $region8: #{tpu_custom_call.1} parent=0 // pred_region
    _
  $region9: #{tpu_custom_call.1} parent=0 // pred_fallthru
    _
  // Predicated region
  $region10: #{tpu_custom_call.1} parent=0 // pred_check
    _
  $region11: #{tpu_custom_call.1} parent=0 // pred_check_branch
    %24 = sbr.rel (0) target = $region13
  $region12: #{tpu_custom_call.1} parent=0 // pred_region
    _
  $region13: #{tpu_custom_call.1} parent=0 // pred_fallthru
    _
  // Predicated region
  $region14: #{tpu_custom_call.1} parent=0 // pred_check
    _
  $region15: #{tpu_custom_call.1} parent=0 // pred_check_branch
    %26 = sbr.rel (0) target = $region17
  $region16: #{tpu_custom_call.1} parent=0 // pred_region
    _
  $region17: #{tpu_custom_call.1} parent=0 // pred_fallthru
    _
  // Predicated region
  $region18: #{tpu_custom_call.1} parent=0 // pred_check
    _
  $region19: #{tpu_custom_call.1} parent=0 // pred_check_branch
    %28 = sbr.rel (0) target = $region21
  $region20: #{tpu_custom_call.1} parent=0 // pred_region
    _
  $region21: #{tpu_custom_call.1} parent=0 // pred_fallthru
    _
  // Predicated region
  $region22: #{tpu_custom_call.1} parent=0 // pred_check
    _
  $region23: #{tpu_custom_call.1} parent=0 // pred_check_branch
    %30 = sbr.rel (0) target = $region25
  $region24: #{tpu_custom_call.1} parent=0 // pred_region
    _
  $region25: #{tpu_custom_call.1} parent=0 // pred_fallthru
    _
  // Predicated region
  $region26: #{tpu_custom_call.1} parent=0 // pred_check
    _
  $region27: #{tpu_custom_call.1} parent=0 // pred_check_branch
    %32 = sbr.rel (0) target = $region29
  $region28: #{tpu_custom_call.1} parent=0 // pred_region
    _
  $region29: #{tpu_custom_call.1} parent=0 // pred_fallthru
    _
  // Predicated region
  $region30: #{tpu_custom_call.1} parent=0 // pred_check
    _
  $region31: #{tpu_custom_call.1} parent=0 // pred_check_branch
    %34 = sbr.rel (0) target = $region33
  $region32: #{tpu_custom_call.1} parent=0 // pred_region
    _
  $region33: #{tpu_custom_call.1} parent=0 // pred_fallthru
    _
  // Predicated region
  $region34: #{tpu_custom_call.1} parent=0 // pred_check
    _
  $region35: #{tpu_custom_call.1} parent=0 // pred_check_branch
    %36 = sbr.rel (0) target = $region37
  $region36: #{tpu_custom_call.1} parent=0 // pred_region
    _
  $region37: #{tpu_custom_call.1} parent=0 // pred_fallthru
    _
  // Predicated region
  $region38: #{tpu_custom_call.1} parent=0 // pred_check
    _
  $region39: #{tpu_custom_call.1} parent=0 // pred_check_branch
    %38 = sbr.rel (0) target = $region41
  $region40: #{tpu_custom_call.1} parent=0 // pred_region
    _
  $region41: #{tpu_custom_call.1} parent=0 // pred_fallthru
    _
  // Predicated region
  $region42: #{tpu_custom_call.1} parent=0 // pred_check
    _
  $region43: #{tpu_custom_call.1} parent=0 // pred_check_branch
    %40 = sbr.rel (0) target = $region45
  $region44: #{tpu_custom_call.1} parent=0 // pred_region
    _
  $region45: #{tpu_custom_call.1} parent=0 // pred_fallthru
    _
  // Predicated region
  $region46: #{tpu_custom_call.1} parent=0 // pred_check
    _
  $region47: #{tpu_custom_call.1} parent=0 // pred_check_branch
    %42 = sbr.rel (0) target = $region49
  $region48: #{tpu_custom_call.1} parent=0 // pred_region
    _
  $region49: #{tpu_custom_call.1} parent=0 // pred_fallthru
    _
  // Predicated region
  $region50: #{tpu_custom_call.1} parent=0 // pred_check
    _
  $region51: #{tpu_custom_call.1} parent=0 // pred_check_branch
    %44 = sbr.rel (0) target = $region53
  $region52: #{tpu_custom_call.1} parent=0 // pred_region
    _
  $region53: #{tpu_custom_call.1} parent=0 // pred_fallthru
    _
  // Predicated region
  $region54: #{tpu_custom_call.1} parent=0 // pred_check
    _
  $region55: #{tpu_custom_call.1} parent=0 // pred_check_branch
    %46 = sbr.rel (0) target = $region57
  $region56: #{tpu_custom_call.1} parent=0 // pred_region
    _
  $region57: #{tpu_custom_call.1} parent=0 // pred_fallthru
    _
  %v48 = vld [vmem:[%s0] sm:$0xff]
  %v49 = vld [vmem:[%s0 + $0x8] sm:$0xff]
  %v50 = vld [vmem:[%s0 + $0x10] sm:$0xff]
  %v51 = vld [vmem:[%s0 + $0x18] sm:$0xff]
  %v52 = vld [vmem:[%s0 + $0x20] sm:$0xff]
  %v53 = vld [vmem:[%s0 + $0x28] sm:$0xff]
  %v54 = vld [vmem:[%s0 + $0x30] sm:$0xff]
  %v55 = vld [vmem:[%s0 + $0x38] sm:$0xff]
  %v56 = vld [vmem:[%s1] sm:$0xff]
  %v57 = vld [vmem:[%s1 + $0x8] sm:$0xff]
  %v58 = vld [vmem:[%s1 + $0x10] sm:$0xff]
  %v59 = vld [vmem:[%s1 + $0x18] sm:$0xff]
  %v60 = vld [vmem:[%s1 + $0x20] sm:$0xff]
  %v61 = vld [vmem:[%s1 + $0x28] sm:$0xff]
  %v62 = vld [vmem:[%s1 + $0x30] sm:$0xff]
  %v63 = vld [vmem:[%s1 + $0x38] sm:$0xff]
  %v64 = vpack.c.bf16 %v49, %v48
  %v65 = vpack.c.bf16 %v51, %v50
  %v66 = vpack.c.bf16 %v53, %v52
  %v67 = vpack.c.bf16 %v55, %v54
  %v68 = vld [vmem:[%s2] sm:$0xff]
  %v69 = vld [vmem:[%s2 + $0x8] sm:$0xff]
  %v70 = vld [vmem:[%s2 + $0x10] sm:$0xff]
  %v71 = vld [vmem:[%s2 + $0x18] sm:$0xff]
  %v72 = vpack.c.bf16 %v69, %v68
  %v73 = vpack.c.bf16 %v71, %v70
  %vm74 = vcmask 261120
  %v76 = vsel %vm74, %v64, 0
  %v79 = vsel %vm74, %v65, 0
  %v82 = vsel %vm74, %v66, 0
  %v85 = vsel %vm74, %v67, 0
  %87 = vmatprep.subr.bf16.mxu0 0
  %88 = vmatpush1.bf16.msra.mxu0 %v72
  %89 = vmatprep.subr.bf16.mxu0 0
  %90 = vmatpush1.bf16.msra.mxu0 %v73
  %91 = vmatprep.subr.bf16.mxu0 0
  %92 = vmatpush1.bf16.msra.mxu0 0
  %93 = vmatprep.subr.bf16.mxu0 0
  %94 = vmatpush1.bf16.msra.mxu0 0
  %95 = vmatprep.subr.bf16.mxu0 0
  %96 = vmatpush1.bf16.msra.mxu0 0
  %97 = vmatprep.subr.bf16.mxu0 0
  %98 = vmatpush1.bf16.msra.mxu0 0
  %99 = vmatprep.subr.bf16.mxu0 0
  %100 = vmatpush1.bf16.msra.mxu0 0
  %101 = vmatprep.subr.bf16.mxu0 0
  %102 = vmatpush1.bf16.msra.mxu0 0
  %103 = vmatprep.subr.bf16.mxu0 0
  %104 = vmatpush1.bf16.msra.mxu0 0
  %105 = vmatprep.subr.bf16.mxu0 0
  %106 = vmatpush1.bf16.msra.mxu0 0
  %107 = vmatprep.subr.bf16.mxu0 0
  %108 = vmatpush1.bf16.msra.mxu0 0
  %109 = vmatprep.subr.bf16.mxu0 0
  %110 = vmatpush1.bf16.msra.mxu0 0
  %111 = vmatprep.subr.bf16.mxu0 0
  %112 = vmatpush1.bf16.msra.mxu0 0
  %113 = vmatprep.subr.bf16.mxu0 0
  %114 = vmatpush1.bf16.msra.mxu0 0
  %115 = vmatprep.subr.bf16.mxu0 0
  %116 = vmatpush1.bf16.msra.mxu0 0
  %117 = vmatprep.subr.bf16.mxu0 0
  %118 = vmatpush1.bf16.msra.mxu0 0
  %119 = vmatprep.mubr.bf16.mxu0 0
  %120 = vmatmul.mubr.bf16.gmra.mrb[0].mxu0 %v76
  %v121 = vpop.f32.mrb[0].mxu0
  %v122 = vadd.f32 0.0, %v121
  %v123 = vpop.f32.mrb[0].mxu0
  %v124 = vpop.f32.mrb[0].mxu0
  %v125 = vadd.f32 0.0, %v124
  %v126 = vpop.f32.mrb[0].mxu0
  %127 = vmatprep.mubr.bf16.mxu0 0
  %128 = vmatmul.mubr.bf16.gmra.mrb[0].mxu0 %v79
  %v129 = vpop.f32.mrb[0].mxu0
  %v130 = vadd.f32 0.0, %v129
  %v131 = vpop.f32.mrb[0].mxu0
  %v132 = vpop.f32.mrb[0].mxu0
  %v133 = vadd.f32 0.0, %v132
  %v134 = vpop.f32.mrb[0].mxu0
  %135 = vmatprep.mubr.bf16.mxu0 0
  %136 = vmatmul.mubr.bf16.gmra.mrb[0].mxu0 %v82
  %v137 = vpop.f32.mrb[0].mxu0
  %v138 = vadd.f32 0.0, %v137
  %v139 = vpop.f32.mrb[0].mxu0
  %v140 = vpop.f32.mrb[0].mxu0
  %v141 = vadd.f32 0.0, %v140
  %v142 = vpop.f32.mrb[0].mxu0
  %143 = vmatprep.mubr.bf16.mxu0 0
  %144 = vmatmul.mubr.bf16.gmra.mrb[0].mxu0 %v85
  %v145 = vpop.f32.mrb[0].mxu0
  %v146 = vadd.f32 0.0, %v145
  %v147 = vpop.f32.mrb[0].mxu0
  %v148 = vpop.f32.mrb[0].mxu0
  %v149 = vadd.f32 0.0, %v148
  %v150 = vpop.f32.mrb[0].mxu0
  %151 = vdwg.mxu0
  %v152 = vld [vmem:[%s3] sm:$0xf]
  %153 = vmatprep.subr.mxu0 0.0
  %154 = vmatpush1.xpose.msra.mxu0 %v122
  %155 = vmatprep.subr.mxu0 0.0
  %156 = vmatpush1.xpose.msra.mxu0 %v125
  %157 = vmatprep.subr.mxu0 0.0
  %158 = vmatpush1.xpose.msra.mxu0 %v130
  %159 = vmatprep.subr.mxu0 0.0
  %160 = vmatpush1.xpose.msra.mxu0 %v133
  %161 = vmatprep.subr.mxu0 0.0
  %162 = vmatpush1.xpose.msra.mxu0 %v138
  %163 = vmatprep.subr.mxu0 0.0
  %164 = vmatpush1.xpose.msra.mxu0 %v141
  %165 = vmatprep.subr.mxu0 0.0
  %166 = vmatpush1.xpose.msra.mxu0 %v146
  %167 = vmatprep.subr.mxu0 0.0
  %168 = vmatpush1.xpose.msra.mxu0 %v149
  %169 = vmatprep.subr.mxu0 0.0
  %170 = vmatpush1.xpose.msra.mxu0 0.0
  %171 = vmatprep.subr.mxu0 0.0
  %172 = vmatpush1.xpose.msra.mxu0 0.0
  %173 = vmatprep.subr.mxu0 0.0
  %174 = vmatpush1.xpose.msra.mxu0 0.0
  %175 = vmatprep.subr.mxu0 0.0
  %176 = vmatpush1.xpose.msra.mxu0 0.0
  %177 = vmatprep.subr.mxu0 0.0
  %178 = vmatpush1.xpose.msra.mxu0 0.0
  %179 = vmatprep.subr.mxu0 0.0
  %180 = vmatpush1.xpose.msra.mxu0 0.0
  %181 = vmatprep.subr.mxu0 0.0
  %182 = vmatpush1.xpose.msra.mxu0 0.0
  %183 = vmatprep.subr.mxu0 0.0
  %184 = vmatpush1.xpose.msra.mxu0 0.0
  %185 = vmatprep.subr.mxu0 0.0
  %186 = vmatpush1.xpose.msra.mxu0 0.0
  %187 = vmatprep.subr.mxu0 0.0
  %188 = vmatpush1.xpose.msra.mxu0 0.0
  %189 = vmatprep.subr.mxu0 0.0
  %190 = vmatpush1.xpose.msra.mxu0 0.0
  %191 = vmatprep.subr.mxu0 0.0
  %192 = vmatpush1.xpose.msra.mxu0 0.0
  %193 = vmatprep.subr.mxu0 0.0
  %194 = vmatpush1.xpose.msra.mxu0 0.0
  %195 = vmatprep.subr.mxu0 0.0
  %196 = vmatpush1.xpose.msra.mxu0 0.0
  %197 = vmatprep.subr.mxu0 0.0
  %198 = vmatpush1.xpose.msra.mxu0 0.0
  %199 = vmatprep.subr.mxu0 0.0
  %200 = vmatpush1.xpose.msra.mxu0 0.0
  %201 = vmatprep.subr.mxu0 0.0
  %202 = vmatpush1.xpose.msra.mxu0 0.0
  %203 = vmatprep.subr.mxu0 0.0
  %204 = vmatpush1.xpose.msra.mxu0 0.0
  %205 = vmatprep.subr.mxu0 0.0
  %206 = vmatpush1.xpose.msra.mxu0 0.0
  %207 = vmatprep.subr.mxu0 0.0
  %208 = vmatpush1.xpose.msra.mxu0 0.0
  %209 = vmatprep.subr.mxu0 0.0
  %210 = vmatpush1.xpose.msra.mxu0 0.0
  %211 = vmatprep.subr.mxu0 0.0
  %212 = vmatpush1.xpose.msra.mxu0 0.0
  %213 = vmatprep.subr.mxu0 0.0
  %214 = vmatpush1.xpose.msra.mxu0 0.0
  %215 = vmatprep.subr.mxu0 0.0
  %216 = vmatpush1.xpose.msra.mxu0 0.0
  %217 = vmatprep.mubr.f32.mxu0 0.0
  %218 = vmatmul.mubr.f32.gmra.mrb[0].mxu0 %v152
  %v219 = vpop.f32.mrb[0].mxu0
  %v220 = vadd.f32 0.0, %v219
  %v221 = vpop.f32.mrb[0].mxu0
  %222 = vdwg.mxu0
  %v223 = vld [vmem:[%s4] sm:$0xf]
  %v224 = vlaneseq
  %v225 = vshrl.u32 %v224, 7
  %v226 = vsub.s32 0, %v225
  %v227 = vrot.slane %v223, %v226
  %v228 = vmul.f32 %v122, %v227
  %v229 = vmul.f32 %v125, %v227
  %v230 = vmul.f32 %v130, %v227
  %v231 = vmul.f32 %v133, %v227
  %v232 = vmul.f32 %v138, %v227
  %v233 = vmul.f32 %v141, %v227
  %v234 = vmul.f32 %v146, %v227
  %v235 = vmul.f32 %v149, %v227
  %v236 = vsel %vm74, %v228, 0.0
  %237 = vadd.xlane.f32.xlu0 %v236
  %v238 = vpop.xlane.xlu0 %237
  %v239 = vsel %vm74, %v229, 0.0
  %240 = vadd.xlane.f32.xlu0 %v239
  %v241 = vpop.xlane.xlu0 %240
  %v242 = vsel %vm74, %v230, 0.0
  %243 = vadd.xlane.f32.xlu0 %v242
  %v244 = vpop.xlane.xlu0 %243
  %v245 = vsel %vm74, %v231, 0.0
  %246 = vadd.xlane.f32.xlu0 %v245
  %v247 = vpop.xlane.xlu0 %246
  %v248 = vsel %vm74, %v232, 0.0
  %249 = vadd.xlane.f32.xlu0 %v248
  %v250 = vpop.xlane.xlu0 %249
  %v251 = vsel %vm74, %v233, 0.0
  %252 = vadd.xlane.f32.xlu0 %v251
  %v253 = vpop.xlane.xlu0 %252
  %v254 = vsel %vm74, %v234, 0.0
  %255 = vadd.xlane.f32.xlu0 %v254
  %v256 = vpop.xlane.xlu0 %255
  %v257 = vsel %vm74, %v235, 0.0
  %258 = vadd.xlane.f32.xlu0 %v257
  %v259 = vpop.xlane.xlu0 %258
  %v260 = vlaneseq
  %v261 = vshrl.u32 %v260, 7
  %v262 = vsub.s32 0, %v261
  %v263 = vrot.slane %v220, %v262
  %v264 = vadd.f32 %v238, %v263
  %v265 = vadd.f32 %v241, %v263
  %v266 = vadd.f32 %v244, %v263
  %v267 = vadd.f32 %v247, %v263
  %v268 = vadd.f32 %v250, %v263
  %v269 = vadd.f32 %v253, %v263
  %v270 = vadd.f32 %v256, %v263
  %v271 = vadd.f32 %v259, %v263
  %v272 = vmul.f32 %v264, 0.2
  %v273 = vmul.f32 %v265, 0.2
  %v274 = vmul.f32 %v266, 0.2
  %v275 = vmul.f32 %v267, 0.2
  %v276 = vmul.f32 %v268, 0.2
  %v277 = vmul.f32 %v269, 0.2
  %v278 = vmul.f32 %v270, 0.2
  %v279 = vmul.f32 %v271, 0.2
  %v280 = vmax.f32 %v264, %v272
  %v281 = vmax.f32 %v265, %v273
  %v282 = vmax.f32 %v266, %v274
  %v283 = vmax.f32 %v267, %v275
  %v284 = vmax.f32 %v268, %v276
  %v285 = vmax.f32 %v269, %v277
  %v286 = vmax.f32 %v270, %v278
  %v287 = vmax.f32 %v271, %v279
  %v288 = vadd.f32 %v280, %v56
  %v289 = vadd.f32 %v281, %v57
  %v290 = vadd.f32 %v282, %v58
  %v291 = vadd.f32 %v283, %v59
  %v292 = vadd.f32 %v284, %v60
  %v293 = vadd.f32 %v285, %v61
  %v294 = vadd.f32 %v286, %v62
  %v295 = vadd.f32 %v287, %v63
  %vm296 = vcmask 523264
  %v297 = vsel %vm296, %v288, -inf
  %298 = vmax.xlane.f32.xlu0 %v297
  %v299 = vpop.xlane.xlu0 %298
  %v300 = vsel %vm296, %v289, -inf
  %301 = vmax.xlane.f32.xlu0 %v300
  %v302 = vpop.xlane.xlu0 %301
  %v303 = vsel %vm296, %v290, -inf
  %304 = vmax.xlane.f32.xlu0 %v303
  %v305 = vpop.xlane.xlu0 %304
  %v306 = vsel %vm296, %v291, -inf
  %307 = vmax.xlane.f32.xlu0 %v306
  %v308 = vpop.xlane.xlu0 %307
  %v309 = vsel %vm296, %v292, -inf
  %310 = vmax.xlane.f32.xlu0 %v309
  %v311 = vpop.xlane.xlu0 %310
  %v312 = vsel %vm296, %v293, -inf
  %313 = vmax.xlane.f32.xlu0 %v312
  %v314 = vpop.xlane.xlu0 %313
  %v315 = vsel %vm296, %v294, -inf
  %316 = vmax.xlane.f32.xlu0 %v315
  %v317 = vpop.xlane.xlu0 %316
  %v318 = vsel %vm296, %v295, -inf
  %319 = vmax.xlane.f32.xlu0 %v318
  %v320 = vpop.xlane.xlu0 %319
  %v321 = vsub.f32 %v288, %v299
  %v322 = vsub.f32 %v289, %v302
  %v323 = vsub.f32 %v290, %v305
  %v324 = vsub.f32 %v291, %v308
  %v325 = vsub.f32 %v292, %v311
  %v326 = vsub.f32 %v293, %v314
  %v327 = vsub.f32 %v294, %v317
  %v328 = vsub.f32 %v295, %v320
  %v329 = vmul.f32 %v321, 1.442695
  %v330 = vpow.pop %v329
  %v331 = vmul.f32 %v322, 1.442695
  %v332 = vpow.pop %v331
  %v333 = vmul.f32 %v323, 1.442695
  %v334 = vpow.pop %v333
  %v335 = vmul.f32 %v324, 1.442695
  %v336 = vpow.pop %v335
  %v337 = vmul.f32 %v325, 1.442695
  %v338 = vpow.pop %v337
  %v339 = vmul.f32 %v326, 1.442695
  %v340 = vpow.pop %v339
  %v341 = vmul.f32 %v327, 1.442695
  %v342 = vpow.pop %v341
  %v343 = vmul.f32 %v328, 1.442695
  %v344 = vpow.pop %v343
  %v345 = vsel %vm296, %v330, 0.0
  %346 = vadd.xlane.f32.xlu0 %v345
  %v347 = vpop.xlane.xlu0 %346
  %v348 = vsel %vm296, %v332, 0.0
  %349 = vadd.xlane.f32.xlu0 %v348
  %v350 = vpop.xlane.xlu0 %349
  %v351 = vsel %vm296, %v334, 0.0
  %352 = vadd.xlane.f32.xlu0 %v351
  %v353 = vpop.xlane.xlu0 %352
  %v354 = vsel %vm296, %v336, 0.0
  %355 = vadd.xlane.f32.xlu0 %v354
  %v356 = vpop.xlane.xlu0 %355
  %v357 = vsel %vm296, %v338, 0.0
  %358 = vadd.xlane.f32.xlu0 %v357
  %v359 = vpop.xlane.xlu0 %358
  %v360 = vsel %vm296, %v340, 0.0
  %361 = vadd.xlane.f32.xlu0 %v360
  %v362 = vpop.xlane.xlu0 %361
  %v363 = vsel %vm296, %v342, 0.0
  %364 = vadd.xlane.f32.xlu0 %v363
  %v365 = vpop.xlane.xlu0 %364
  %v366 = vsel %vm296, %v344, 0.0
  %367 = vadd.xlane.f32.xlu0 %v366
  %v368 = vpop.xlane.xlu0 %367
  %v369 = vrcp.pop %v347
  %v370 = vrcp.pop %v350
  %v371 = vrcp.pop %v353
  %v372 = vrcp.pop %v356
  %v373 = vrcp.pop %v359
  %v374 = vrcp.pop %v362
  %v375 = vrcp.pop %v365
  %v376 = vrcp.pop %v368
  %v377 = vmul.f32 %v330, %v369
  %v378 = vmul.f32 %v332, %v370
  %v379 = vmul.f32 %v334, %v371
  %v380 = vmul.f32 %v336, %v372
  %v381 = vmul.f32 %v338, %v373
  %v382 = vmul.f32 %v340, %v374
  %v383 = vmul.f32 %v342, %v375
  %v384 = vmul.f32 %v344, %v376
  %v385 = vpack.c.bf16 %v378, %v377
  %v386 = vpack.c.bf16 %v380, %v379
  %v387 = vpack.c.bf16 %v382, %v381
  %v388 = vpack.c.bf16 %v384, %v383
  %v389 = vpack.c.bf16 %v125, %v122
  %v390 = vpack.c.bf16 %v133, %v130
  %v391 = vpack.c.bf16 %v141, %v138
  %v392 = vpack.c.bf16 %v149, %v146
  %v394 = vsel %vm296, %v385, 0
  %v397 = vsel %vm296, %v386, 0
  %v400 = vsel %vm296, %v387, 0
  %v403 = vsel %vm296, %v388, 0
  %405 = vmatprep.subr.bf16.mxu0 0
  %406 = vmatpush1.bf16.msra.mxu0 %v389
  %407 = vmatprep.subr.bf16.mxu0 0
  %408 = vmatpush1.bf16.msra.mxu0 %v390
  %409 = vmatprep.subr.bf16.mxu0 0
  %410 = vmatpush1.bf16.msra.mxu0 %v391
  %411 = vmatprep.subr.bf16.mxu0 0
  %412 = vmatpush1.bf16.msra.mxu0 %v392
  %413 = vmatprep.subr.bf16.mxu0 0
  %414 = vmatpush1.bf16.msra.mxu0 0
  %415 = vmatprep.subr.bf16.mxu0 0
  %416 = vmatpush1.bf16.msra.mxu0 0
  %417 = vmatprep.subr.bf16.mxu0 0
  %418 = vmatpush1.bf16.msra.mxu0 0
  %419 = vmatprep.subr.bf16.mxu0 0
  %420 = vmatpush1.bf16.msra.mxu0 0
  %421 = vmatprep.subr.bf16.mxu0 0
  %422 = vmatpush1.bf16.msra.mxu0 0
  %423 = vmatprep.subr.bf16.mxu0 0
  %424 = vmatpush1.bf16.msra.mxu0 0
  %425 = vmatprep.subr.bf16.mxu0 0
  %426 = vmatpush1.bf16.msra.mxu0 0
  %427 = vmatprep.subr.bf16.mxu0 0
  %428 = vmatpush1.bf16.msra.mxu0 0
  %429 = vmatprep.subr.bf16.mxu0 0
  %430 = vmatpush1.bf16.msra.mxu0 0
  %431 = vmatprep.subr.bf16.mxu0 0
  %432 = vmatpush1.bf16.msra.mxu0 0
  %433 = vmatprep.subr.bf16.mxu0 0
  %434 = vmatpush1.bf16.msra.mxu0 0
  %435 = vmatprep.subr.bf16.mxu0 0
  %436 = vmatpush1.bf16.msra.mxu0 0
  %437 = vmatprep.mubr.bf16.mxu0 0
  %438 = vmatmul.mubr.bf16.gmra.mrb[0].mxu0 %v394
  %v439 = vpop.f32.mrb[0].mxu0
  %v440 = vadd.f32 0.0, %v439
  %v441 = vpop.f32.mrb[0].mxu0
  %v442 = vpop.f32.mrb[0].mxu0
  %v443 = vadd.f32 0.0, %v442
  %v444 = vpop.f32.mrb[0].mxu0
  %445 = vmatprep.mubr.bf16.mxu0 0
  %446 = vmatmul.mubr.bf16.gmra.mrb[0].mxu0 %v397
  %v447 = vpop.f32.mrb[0].mxu0
  %v448 = vadd.f32 0.0, %v447
  %v449 = vpop.f32.mrb[0].mxu0
  %v450 = vpop.f32.mrb[0].mxu0
  %v451 = vadd.f32 0.0, %v450
  %v452 = vpop.f32.mrb[0].mxu0
  %453 = vmatprep.mubr.bf16.mxu0 0
  %454 = vmatmul.mubr.bf16.gmra.mrb[0].mxu0 %v400
  %v455 = vpop.f32.mrb[0].mxu0
  %v456 = vadd.f32 0.0, %v455
  %v457 = vpop.f32.mrb[0].mxu0
  %v458 = vpop.f32.mrb[0].mxu0
  %v459 = vadd.f32 0.0, %v458
  %v460 = vpop.f32.mrb[0].mxu0
  %461 = vmatprep.mubr.bf16.mxu0 0
  %462 = vmatmul.mubr.bf16.gmra.mrb[0].mxu0 %v403
  %v463 = vpop.f32.mrb[0].mxu0
  %v464 = vadd.f32 0.0, %v463
  %v465 = vpop.f32.mrb[0].mxu0
  %v466 = vpop.f32.mrb[0].mxu0
  %v467 = vadd.f32 0.0, %v466
  %v468 = vpop.f32.mrb[0].mxu0
  %469 = vdwg.mxu0
  %v470 = vlaneseq
  %v471 = vshrl.u32 %v470, 7
  %v472 = vsub.s32 1, %v471
  %v473 = vrot.slane %v223, %v472
  %475 = vrot.lane.b32.xlu0 %v473, 32
  %v476 = vpop.permute.xlu0 %475
  %v478 = vmul.f32 %v122, %v476
  %v479 = vmul.f32 %v125, %v476
  %v480 = vmul.f32 %v130, %v476
  %v481 = vmul.f32 %v133, %v476
  %v482 = vmul.f32 %v138, %v476
  %v483 = vmul.f32 %v141, %v476
  %v484 = vmul.f32 %v146, %v476
  %v485 = vmul.f32 %v149, %v476
  %494 = vrot.lane.b32.xlu0 %v478, 96
  %v495 = vpop.permute.xlu0 %494
  %496 = vrot.lane.b32.xlu0 %v479, 96
  %v497 = vpop.permute.xlu0 %496
  %498 = vrot.lane.b32.xlu0 %v480, 96
  %v499 = vpop.permute.xlu0 %498
  %500 = vrot.lane.b32.xlu0 %v481, 96
  %v501 = vpop.permute.xlu0 %500
  %502 = vrot.lane.b32.xlu0 %v482, 96
  %v503 = vpop.permute.xlu0 %502
  %504 = vrot.lane.b32.xlu0 %v483, 96
  %v505 = vpop.permute.xlu0 %504
  %506 = vrot.lane.b32.xlu0 %v484, 96
  %v507 = vpop.permute.xlu0 %506
  %508 = vrot.lane.b32.xlu0 %v485, 96
  %v509 = vpop.permute.xlu0 %508
  %v518 = vsel %vm74, %v495, 0.0
  %519 = vadd.xlane.f32.xlu0 %v518
  %v520 = vpop.xlane.xlu0 %519
  %v521 = vsel %vm74, %v497, 0.0
  %522 = vadd.xlane.f32.xlu0 %v521
  %v523 = vpop.xlane.xlu0 %522
  %v524 = vsel %vm74, %v499, 0.0
  %525 = vadd.xlane.f32.xlu0 %v524
  %v526 = vpop.xlane.xlu0 %525
  %v527 = vsel %vm74, %v501, 0.0
  %528 = vadd.xlane.f32.xlu0 %v527
  %v529 = vpop.xlane.xlu0 %528
  %v530 = vsel %vm74, %v503, 0.0
  %531 = vadd.xlane.f32.xlu0 %v530
  %v532 = vpop.xlane.xlu0 %531
  %v533 = vsel %vm74, %v505, 0.0
  %534 = vadd.xlane.f32.xlu0 %v533
  %v535 = vpop.xlane.xlu0 %534
  %v536 = vsel %vm74, %v507, 0.0
  %537 = vadd.xlane.f32.xlu0 %v536
  %v538 = vpop.xlane.xlu0 %537
  %v539 = vsel %vm74, %v509, 0.0
  %540 = vadd.xlane.f32.xlu0 %v539
  %v541 = vpop.xlane.xlu0 %540
  %v542 = vlaneseq
  %v543 = vshrl.u32 %v542, 7
  %v544 = vsub.s32 1, %v543
  %v545 = vrot.slane %v220, %v544
  %v546 = vadd.f32 %v520, %v545
  %v547 = vadd.f32 %v523, %v545
  %v548 = vadd.f32 %v526, %v545
  %v549 = vadd.f32 %v529, %v545
  %v550 = vadd.f32 %v532, %v545
  %v551 = vadd.f32 %v535, %v545
  %v552 = vadd.f32 %v538, %v545
  %v553 = vadd.f32 %v541, %v545
  %v554 = vmul.f32 %v546, 0.2
  %v555 = vmul.f32 %v547, 0.2
  %v556 = vmul.f32 %v548, 0.2
  %v557 = vmul.f32 %v549, 0.2
  %v558 = vmul.f32 %v550, 0.2
  %v559 = vmul.f32 %v551, 0.2
  %v560 = vmul.f32 %v552, 0.2
  %v561 = vmul.f32 %v553, 0.2
  %v562 = vmax.f32 %v546, %v554
  %v563 = vmax.f32 %v547, %v555
  %v564 = vmax.f32 %v548, %v556
  %v565 = vmax.f32 %v549, %v557
  %v566 = vmax.f32 %v550, %v558
  %v567 = vmax.f32 %v551, %v559
  %v568 = vmax.f32 %v552, %v560
  %v569 = vmax.f32 %v553, %v561
  %v570 = vadd.f32 %v562, %v56
  %v571 = vadd.f32 %v563, %v57
  %v572 = vadd.f32 %v564, %v58
  %v573 = vadd.f32 %v565, %v59
  %v574 = vadd.f32 %v566, %v60
  %v575 = vadd.f32 %v567, %v61
  %v576 = vadd.f32 %v568, %v62
  %v577 = vadd.f32 %v569, %v63
  %v578 = vsel %vm296, %v570, -inf
  %579 = vmax.xlane.f32.xlu0 %v578
  %v580 = vpop.xlane.xlu0 %579
  %v581 = vsel %vm296, %v571, -inf
  %582 = vmax.xlane.f32.xlu0 %v581
  %v583 = vpop.xlane.xlu0 %582
  %v584 = vsel %vm296, %v572, -inf
  %585 = vmax.xlane.f32.xlu0 %v584
  %v586 = vpop.xlane.xlu0 %585
  %v587 = vsel %vm296, %v573, -inf
  %588 = vmax.xlane.f32.xlu0 %v587
  %v589 = vpop.xlane.xlu0 %588
  %v590 = vsel %vm296, %v574, -inf
  %591 = vmax.xlane.f32.xlu0 %v590
  %v592 = vpop.xlane.xlu0 %591
  %v593 = vsel %vm296, %v575, -inf
  %594 = vmax.xlane.f32.xlu0 %v593
  %v595 = vpop.xlane.xlu0 %594
  %v596 = vsel %vm296, %v576, -inf
  %597 = vmax.xlane.f32.xlu0 %v596
  %v598 = vpop.xlane.xlu0 %597
  %v599 = vsel %vm296, %v577, -inf
  %600 = vmax.xlane.f32.xlu0 %v599
  %v601 = vpop.xlane.xlu0 %600
  %v602 = vsub.f32 %v570, %v580
  %v603 = vsub.f32 %v571, %v583
  %v604 = vsub.f32 %v572, %v586
  %v605 = vsub.f32 %v573, %v589
  %v606 = vsub.f32 %v574, %v592
  %v607 = vsub.f32 %v575, %v595
  %v608 = vsub.f32 %v576, %v598
  %v609 = vsub.f32 %v577, %v601
  %v610 = vmul.f32 %v602, 1.442695
  %v611 = vpow.pop %v610
  %v612 = vmul.f32 %v603, 1.442695
  %v613 = vpow.pop %v612
  %v614 = vmul.f32 %v604, 1.442695
  %v615 = vpow.pop %v614
  %v616 = vmul.f32 %v605, 1.442695
  %v617 = vpow.pop %v616
  %v618 = vmul.f32 %v606, 1.442695
  %v619 = vpow.pop %v618
  %v620 = vmul.f32 %v607, 1.442695
  %v621 = vpow.pop %v620
  %v622 = vmul.f32 %v608, 1.442695
  %v623 = vpow.pop %v622
  %v624 = vmul.f32 %v609, 1.442695
  %v625 = vpow.pop %v624
  %v626 = vsel %vm296, %v611, 0.0
  %627 = vadd.xlane.f32.xlu0 %v626
  %v628 = vpop.xlane.xlu0 %627
  %v629 = vsel %vm296, %v613, 0.0
  %630 = vadd.xlane.f32.xlu0 %v629
  %v631 = vpop.xlane.xlu0 %630
  %v632 = vsel %vm296, %v615, 0.0
  %633 = vadd.xlane.f32.xlu0 %v632
  %v634 = vpop.xlane.xlu0 %633
  %v635 = vsel %vm296, %v617, 0.0
  %636 = vadd.xlane.f32.xlu0 %v635
  %v637 = vpop.xlane.xlu0 %636
  %v638 = vsel %vm296, %v619, 0.0
  %639 = vadd.xlane.f32.xlu0 %v638
  %v640 = vpop.xlane.xlu0 %639
  %v641 = vsel %vm296, %v621, 0.0
  %642 = vadd.xlane.f32.xlu0 %v641
  %v643 = vpop.xlane.xlu0 %642
  %v644 = vsel %vm296, %v623, 0.0
  %645 = vadd.xlane.f32.xlu0 %v644
  %v646 = vpop.xlane.xlu0 %645
  %v647 = vsel %vm296, %v625, 0.0
  %648 = vadd.xlane.f32.xlu0 %v647
  %v649 = vpop.xlane.xlu0 %648
  %v650 = vrcp.pop %v628
  %v651 = vrcp.pop %v631
  %v652 = vrcp.pop %v634
  %v653 = vrcp.pop %v637
  %v654 = vrcp.pop %v640
  %v655 = vrcp.pop %v643
  %v656 = vrcp.pop %v646
  %v657 = vrcp.pop %v649
  %v658 = vmul.f32 %v611, %v650
  %v659 = vmul.f32 %v613, %v651
  %v660 = vmul.f32 %v615, %v652
  %v661 = vmul.f32 %v617, %v653
  %v662 = vmul.f32 %v619, %v654
  %v663 = vmul.f32 %v621, %v655
  %v664 = vmul.f32 %v623, %v656
  %v665 = vmul.f32 %v625, %v657
  %v666 = vpack.c.bf16 %v659, %v658
  %v667 = vpack.c.bf16 %v661, %v660
  %v668 = vpack.c.bf16 %v663, %v662
  %v669 = vpack.c.bf16 %v665, %v664
  %674 = vrot.lane.b32.xlu0 %v389, 96
  %v675 = vpop.permute.xlu0 %674
  %676 = vrot.lane.b32.xlu0 %v390, 96
  %v677 = vpop.permute.xlu0 %676
  %678 = vrot.lane.b32.xlu0 %v391, 96
  %v679 = vpop.permute.xlu0 %678
  %680 = vrot.lane.b32.xlu0 %v392, 96
  %v681 = vpop.permute.xlu0 %680
  %v687 = vsel %vm296, %v666, 0
  %v690 = vsel %vm296, %v667, 0
  %v693 = vsel %vm296, %v668, 0
  %v696 = vsel %vm296, %v669, 0
  %698 = vmatprep.subr.bf16.mxu0 0
  %699 = vmatpush1.bf16.msra.mxu0 %v675
  %700 = vmatprep.subr.bf16.mxu0 0
  %701 = vmatpush1.bf16.msra.mxu0 %v677
  %702 = vmatprep.subr.bf16.mxu0 0
  %703 = vmatpush1.bf16.msra.mxu0 %v679
  %704 = vmatprep.subr.bf16.mxu0 0
  %705 = vmatpush1.bf16.msra.mxu0 %v681
  %706 = vmatprep.subr.bf16.mxu0 0
  %707 = vmatpush1.bf16.msra.mxu0 0
  %708 = vmatprep.subr.bf16.mxu0 0
  %709 = vmatpush1.bf16.msra.mxu0 0
  %710 = vmatprep.subr.bf16.mxu0 0
  %711 = vmatpush1.bf16.msra.mxu0 0
  %712 = vmatprep.subr.bf16.mxu0 0
  %713 = vmatpush1.bf16.msra.mxu0 0
  %714 = vmatprep.subr.bf16.mxu0 0
  %715 = vmatpush1.bf16.msra.mxu0 0
  %716 = vmatprep.subr.bf16.mxu0 0
  %717 = vmatpush1.bf16.msra.mxu0 0
  %718 = vmatprep.subr.bf16.mxu0 0
  %719 = vmatpush1.bf16.msra.mxu0 0
  %720 = vmatprep.subr.bf16.mxu0 0
  %721 = vmatpush1.bf16.msra.mxu0 0
  %722 = vmatprep.subr.bf16.mxu0 0
  %723 = vmatpush1.bf16.msra.mxu0 0
  %724 = vmatprep.subr.bf16.mxu0 0
  %725 = vmatpush1.bf16.msra.mxu0 0
  %726 = vmatprep.subr.bf16.mxu0 0
  %727 = vmatpush1.bf16.msra.mxu0 0
  %728 = vmatprep.subr.bf16.mxu0 0
  %729 = vmatpush1.bf16.msra.mxu0 0
  %730 = vmatprep.mubr.bf16.mxu0 0
  %731 = vmatmul.mubr.bf16.gmra.mrb[0].mxu0 %v687
  %v732 = vpop.f32.mrb[0].mxu0
  %v733 = vadd.f32 0.0, %v732
  %v734 = vpop.f32.mrb[0].mxu0
  %v735 = vpop.f32.mrb[0].mxu0
  %v736 = vadd.f32 0.0, %v735
  %v737 = vpop.f32.mrb[0].mxu0
  %738 = vmatprep.mubr.bf16.mxu0 0
  %739 = vmatmul.mubr.bf16.gmra.mrb[0].mxu0 %v690
  %v740 = vpop.f32.mrb[0].mxu0
  %v741 = vadd.f32 0.0, %v740
  %v742 = vpop.f32.mrb[0].mxu0
  %v743 = vpop.f32.mrb[0].mxu0
  %v744 = vadd.f32 0.0, %v743
  %v745 = vpop.f32.mrb[0].mxu0
  %746 = vmatprep.mubr.bf16.mxu0 0
  %747 = vmatmul.mubr.bf16.gmra.mrb[0].mxu0 %v693
  %v748 = vpop.f32.mrb[0].mxu0
  %v749 = vadd.f32 0.0, %v748
  %v750 = vpop.f32.mrb[0].mxu0
  %v751 = vpop.f32.mrb[0].mxu0
  %v752 = vadd.f32 0.0, %v751
  %v753 = vpop.f32.mrb[0].mxu0
  %754 = vmatprep.mubr.bf16.mxu0 0
  %755 = vmatmul.mubr.bf16.gmra.mrb[0].mxu0 %v696
  %v756 = vpop.f32.mrb[0].mxu0
  %v757 = vadd.f32 0.0, %v756
  %v758 = vpop.f32.mrb[0].mxu0
  %v759 = vpop.f32.mrb[0].mxu0
  %v760 = vadd.f32 0.0, %v759
  %v761 = vpop.f32.mrb[0].mxu0
  %762 = vdwg.mxu0
  %v763 = vlaneseq
  %v764 = vshrl.u32 %v763, 7
  %v765 = vsub.s32 2, %v764
  %v766 = vrot.slane %v223, %v765
  %768 = vrot.lane.b32.xlu0 %v766, 64
  %v769 = vpop.permute.xlu0 %768
  %v771 = vmul.f32 %v122, %v769
  %v772 = vmul.f32 %v125, %v769
  %v773 = vmul.f32 %v130, %v769
  %v774 = vmul.f32 %v133, %v769
  %v775 = vmul.f32 %v138, %v769
  %v776 = vmul.f32 %v141, %v769
  %v777 = vmul.f32 %v146, %v769
  %v778 = vmul.f32 %v149, %v769
  %787 = vrot.lane.b32.xlu0 %v771, 64
  %v788 = vpop.permute.xlu0 %787
  %789 = vrot.lane.b32.xlu0 %v772, 64
  %v790 = vpop.permute.xlu0 %789
  %791 = vrot.lane.b32.xlu0 %v773, 64
  %v792 = vpop.permute.xlu0 %791
  %793 = vrot.lane.b32.xlu0 %v774, 64
  %v794 = vpop.permute.xlu0 %793
  %795 = vrot.lane.b32.xlu0 %v775, 64
  %v796 = vpop.permute.xlu0 %795
  %797 = vrot.lane.b32.xlu0 %v776, 64
  %v798 = vpop.permute.xlu0 %797
  %799 = vrot.lane.b32.xlu0 %v777, 64
  %v800 = vpop.permute.xlu0 %799
  %801 = vrot.lane.b32.xlu0 %v778, 64
  %v802 = vpop.permute.xlu0 %801
  %v811 = vsel %vm74, %v788, 0.0
  %812 = vadd.xlane.f32.xlu0 %v811
  %v813 = vpop.xlane.xlu0 %812
  %v814 = vsel %vm74, %v790, 0.0
  %815 = vadd.xlane.f32.xlu0 %v814
  %v816 = vpop.xlane.xlu0 %815
  %v817 = vsel %vm74, %v792, 0.0
  %818 = vadd.xlane.f32.xlu0 %v817
  %v819 = vpop.xlane.xlu0 %818
  %v820 = vsel %vm74, %v794, 0.0
  %821 = vadd.xlane.f32.xlu0 %v820
  %v822 = vpop.xlane.xlu0 %821
  %v823 = vsel %vm74, %v796, 0.0
  %824 = vadd.xlane.f32.xlu0 %v823
  %v825 = vpop.xlane.xlu0 %824
  %v826 = vsel %vm74, %v798, 0.0
  %827 = vadd.xlane.f32.xlu0 %v826
  %v828 = vpop.xlane.xlu0 %827
  %v829 = vsel %vm74, %v800, 0.0
  %830 = vadd.xlane.f32.xlu0 %v829
  %v831 = vpop.xlane.xlu0 %830
  %v832 = vsel %vm74, %v802, 0.0
  %833 = vadd.xlane.f32.xlu0 %v832
  %v834 = vpop.xlane.xlu0 %833
  %v835 = vlaneseq
  %v836 = vshrl.u32 %v835, 7
  %v837 = vsub.s32 2, %v836
  %v838 = vrot.slane %v220, %v837
  %v839 = vadd.f32 %v813, %v838
  %v840 = vadd.f32 %v816, %v838
  %v841 = vadd.f32 %v819, %v838
  %v842 = vadd.f32 %v822, %v838
  %v843 = vadd.f32 %v825, %v838
  %v844 = vadd.f32 %v828, %v838
  %v845 = vadd.f32 %v831, %v838
  %v846 = vadd.f32 %v834, %v838
  %v847 = vmul.f32 %v839, 0.2
  %v848 = vmul.f32 %v840, 0.2
  %v849 = vmul.f32 %v841, 0.2
  %v850 = vmul.f32 %v842, 0.2
  %v851 = vmul.f32 %v843, 0.2
  %v852 = vmul.f32 %v844, 0.2
  %v853 = vmul.f32 %v845, 0.2
  %v854 = vmul.f32 %v846, 0.2
  %v855 = vmax.f32 %v839, %v847
  %v856 = vmax.f32 %v840, %v848
  %v857 = vmax.f32 %v841, %v849
  %v858 = vmax.f32 %v842, %v850
  %v859 = vmax.f32 %v843, %v851
  %v860 = vmax.f32 %v844, %v852
  %v861 = vmax.f32 %v845, %v853
  %v862 = vmax.f32 %v846, %v854
  %v863 = vadd.f32 %v855, %v56
  %v864 = vadd.f32 %v856, %v57
  %v865 = vadd.f32 %v857, %v58
  %v866 = vadd.f32 %v858, %v59
  %v867 = vadd.f32 %v859, %v60
  %v868 = vadd.f32 %v860, %v61
  %v869 = vadd.f32 %v861, %v62
  %v870 = vadd.f32 %v862, %v63
  %v871 = vsel %vm296, %v863, -inf
  %872 = vmax.xlane.f32.xlu0 %v871
  %v873 = vpop.xlane.xlu0 %872
  %v874 = vsel %vm296, %v864, -inf
  %875 = vmax.xlane.f32.xlu0 %v874
  %v876 = vpop.xlane.xlu0 %875
  %v877 = vsel %vm296, %v865, -inf
  %878 = vmax.xlane.f32.xlu0 %v877
  %v879 = vpop.xlane.xlu0 %878
  %v880 = vsel %vm296, %v866, -inf
  %881 = vmax.xlane.f32.xlu0 %v880
  %v882 = vpop.xlane.xlu0 %881
  %v883 = vsel %vm296, %v867, -inf
  %884 = vmax.xlane.f32.xlu0 %v883
  %v885 = vpop.xlane.xlu0 %884
  %v886 = vsel %vm296, %v868, -inf
  %887 = vmax.xlane.f32.xlu0 %v886
  %v888 = vpop.xlane.xlu0 %887
  %v889 = vsel %vm296, %v869, -inf
  %890 = vmax.xlane.f32.xlu0 %v889
  %v891 = vpop.xlane.xlu0 %890
  %v892 = vsel %vm296, %v870, -inf
  %893 = vmax.xlane.f32.xlu0 %v892
  %v894 = vpop.xlane.xlu0 %893
  %v895 = vsub.f32 %v863, %v873
  %v896 = vsub.f32 %v864, %v876
  %v897 = vsub.f32 %v865, %v879
  %v898 = vsub.f32 %v866, %v882
  %v899 = vsub.f32 %v867, %v885
  %v900 = vsub.f32 %v868, %v888
  %v901 = vsub.f32 %v869, %v891
  %v902 = vsub.f32 %v870, %v894
  %v903 = vmul.f32 %v895, 1.442695
  %v904 = vpow.pop %v903
  %v905 = vmul.f32 %v896, 1.442695
  %v906 = vpow.pop %v905
  %v907 = vmul.f32 %v897, 1.442695
  %v908 = vpow.pop %v907
  %v909 = vmul.f32 %v898, 1.442695
  %v910 = vpow.pop %v909
  %v911 = vmul.f32 %v899, 1.442695
  %v912 = vpow.pop %v911
  %v913 = vmul.f32 %v900, 1.442695
  %v914 = vpow.pop %v913
  %v915 = vmul.f32 %v901, 1.442695
  %v916 = vpow.pop %v915
  %v917 = vmul.f32 %v902, 1.442695
  %v918 = vpow.pop %v917
  %v919 = vsel %vm296, %v904, 0.0
  %920 = vadd.xlane.f32.xlu0 %v919
  %v921 = vpop.xlane.xlu0 %920
  %v922 = vsel %vm296, %v906, 0.0
  %923 = vadd.xlane.f32.xlu0 %v922
  %v924 = vpop.xlane.xlu0 %923
  %v925 = vsel %vm296, %v908, 0.0
  %926 = vadd.xlane.f32.xlu0 %v925
  %v927 = vpop.xlane.xlu0 %926
  %v928 = vsel %vm296, %v910, 0.0
  %929 = vadd.xlane.f32.xlu0 %v928
  %v930 = vpop.xlane.xlu0 %929
  %v931 = vsel %vm296, %v912, 0.0
  %932 = vadd.xlane.f32.xlu0 %v931
  %v933 = vpop.xlane.xlu0 %932
  %v934 = vsel %vm296, %v914, 0.0
  %935 = vadd.xlane.f32.xlu0 %v934
  %v936 = vpop.xlane.xlu0 %935
  %v937 = vsel %vm296, %v916, 0.0
  %938 = vadd.xlane.f32.xlu0 %v937
  %v939 = vpop.xlane.xlu0 %938
  %v940 = vsel %vm296, %v918, 0.0
  %941 = vadd.xlane.f32.xlu0 %v940
  %v942 = vpop.xlane.xlu0 %941
  %v943 = vrcp.pop %v921
  %v944 = vrcp.pop %v924
  %v945 = vrcp.pop %v927
  %v946 = vrcp.pop %v930
  %v947 = vrcp.pop %v933
  %v948 = vrcp.pop %v936
  %v949 = vrcp.pop %v939
  %v950 = vrcp.pop %v942
  %v951 = vmul.f32 %v904, %v943
  %v952 = vmul.f32 %v906, %v944
  %v953 = vmul.f32 %v908, %v945
  %v954 = vmul.f32 %v910, %v946
  %v955 = vmul.f32 %v912, %v947
  %v956 = vmul.f32 %v914, %v948
  %v957 = vmul.f32 %v916, %v949
  %v958 = vmul.f32 %v918, %v950
  %v959 = vpack.c.bf16 %v952, %v951
  %v960 = vpack.c.bf16 %v954, %v953
  %v961 = vpack.c.bf16 %v956, %v955
  %v962 = vpack.c.bf16 %v958, %v957
  %963 = vrot.lane.b32.xlu0 %v389, 64
  %v964 = vpop.permute.xlu0 %963
  %965 = vrot.lane.b32.xlu0 %v390, 64
  %v966 = vpop.permute.xlu0 %965
  %967 = vrot.lane.b32.xlu0 %v391, 64
  %v968 = vpop.permute.xlu0 %967
  %969 = vrot.lane.b32.xlu0 %v392, 64
  %v970 = vpop.permute.xlu0 %969
  %v976 = vsel %vm296, %v959, 0
  %v979 = vsel %vm296, %v960, 0
  %v982 = vsel %vm296, %v961, 0
  %v985 = vsel %vm296, %v962, 0
  %987 = vmatprep.subr.bf16.mxu0 0
  %988 = vmatpush1.bf16.msra.mxu0 %v964
  %989 = vmatprep.subr.bf16.mxu0 0
  %990 = vmatpush1.bf16.msra.mxu0 %v966
  %991 = vmatprep.subr.bf16.mxu0 0
  %992 = vmatpush1.bf16.msra.mxu0 %v968
  %993 = vmatprep.subr.bf16.mxu0 0
  %994 = vmatpush1.bf16.msra.mxu0 %v970
  %995 = vmatprep.subr.bf16.mxu0 0
  %996 = vmatpush1.bf16.msra.mxu0 0
  %997 = vmatprep.subr.bf16.mxu0 0
  %998 = vmatpush1.bf16.msra.mxu0 0
  %999 = vmatprep.subr.bf16.mxu0 0
  %1000 = vmatpush1.bf16.msra.mxu0 0
  %1001 = vmatprep.subr.bf16.mxu0 0
  %1002 = vmatpush1.bf16.msra.mxu0 0
  %1003 = vmatprep.subr.bf16.mxu0 0
  %1004 = vmatpush1.bf16.msra.mxu0 0
  %1005 = vmatprep.subr.bf16.mxu0 0
  %1006 = vmatpush1.bf16.msra.mxu0 0
  %1007 = vmatprep.subr.bf16.mxu0 0
  %1008 = vmatpush1.bf16.msra.mxu0 0
  %1009 = vmatprep.subr.bf16.mxu0 0
  %1010 = vmatpush1.bf16.msra.mxu0 0
  %1011 = vmatprep.subr.bf16.mxu0 0
  %1012 = vmatpush1.bf16.msra.mxu0 0
  %1013 = vmatprep.subr.bf16.mxu0 0
  %1014 = vmatpush1.bf16.msra.mxu0 0
  %1015 = vmatprep.subr.bf16.mxu0 0
  %1016 = vmatpush1.bf16.msra.mxu0 0
  %1017 = vmatprep.subr.bf16.mxu0 0
  %1018 = vmatpush1.bf16.msra.mxu0 0
  %1019 = vmatprep.mubr.bf16.mxu0 0
  %1020 = vmatmul.mubr.bf16.gmra.mrb[0].mxu0 %v976
  %v1021 = vpop.f32.mrb[0].mxu0
  %v1022 = vadd.f32 0.0, %v1021
  %v1023 = vpop.f32.mrb[0].mxu0
  %v1024 = vpop.f32.mrb[0].mxu0
  %v1025 = vadd.f32 0.0, %v1024
  %v1026 = vpop.f32.mrb[0].mxu0
  %1027 = vmatprep.mubr.bf16.mxu0 0
  %1028 = vmatmul.mubr.bf16.gmra.mrb[0].mxu0 %v979
  %v1029 = vpop.f32.mrb[0].mxu0
  %v1030 = vadd.f32 0.0, %v1029
  %v1031 = vpop.f32.mrb[0].mxu0
  %v1032 = vpop.f32.mrb[0].mxu0
  %v1033 = vadd.f32 0.0, %v1032
  %v1034 = vpop.f32.mrb[0].mxu0
  %1035 = vmatprep.mubr.bf16.mxu0 0
  %1036 = vmatmul.mubr.bf16.gmra.mrb[0].mxu0 %v982
  %v1037 = vpop.f32.mrb[0].mxu0
  %v1038 = vadd.f32 0.0, %v1037
  %v1039 = vpop.f32.mrb[0].mxu0
  %v1040 = vpop.f32.mrb[0].mxu0
  %v1041 = vadd.f32 0.0, %v1040
  %v1042 = vpop.f32.mrb[0].mxu0
  %1043 = vmatprep.mubr.bf16.mxu0 0
  %1044 = vmatmul.mubr.bf16.gmra.mrb[0].mxu0 %v985
  %v1045 = vpop.f32.mrb[0].mxu0
  %v1046 = vadd.f32 0.0, %v1045
  %v1047 = vpop.f32.mrb[0].mxu0
  %v1048 = vpop.f32.mrb[0].mxu0
  %v1049 = vadd.f32 0.0, %v1048
  %v1050 = vpop.f32.mrb[0].mxu0
  %1051 = vdwg.mxu0
  %v1052 = vlaneseq
  %v1053 = vshrl.u32 %v1052, 7
  %v1054 = vsub.s32 3, %v1053
  %v1055 = vrot.slane %v223, %v1054
  %1057 = vrot.lane.b32.xlu0 %v1055, 96
  %v1058 = vpop.permute.xlu0 %1057
  %v1060 = vmul.f32 %v122, %v1058
  %v1061 = vmul.f32 %v125, %v1058
  %v1062 = vmul.f32 %v130, %v1058
  %v1063 = vmul.f32 %v133, %v1058
  %v1064 = vmul.f32 %v138, %v1058
  %v1065 = vmul.f32 %v141, %v1058
  %v1066 = vmul.f32 %v146, %v1058
  %v1067 = vmul.f32 %v149, %v1058
  %1076 = vrot.lane.b32.xlu0 %v1060, 32
  %v1077 = vpop.permute.xlu0 %1076
  %1078 = vrot.lane.b32.xlu0 %v1061, 32
  %v1079 = vpop.permute.xlu0 %1078
  %1080 = vrot.lane.b32.xlu0 %v1062, 32
  %v1081 = vpop.permute.xlu0 %1080
  %1082 = vrot.lane.b32.xlu0 %v1063, 32
  %v1083 = vpop.permute.xlu0 %1082
  %1084 = vrot.lane.b32.xlu0 %v1064, 32
  %v1085 = vpop.permute.xlu0 %1084
  %1086 = vrot.lane.b32.xlu0 %v1065, 32
  %v1087 = vpop.permute.xlu0 %1086
  %1088 = vrot.lane.b32.xlu0 %v1066, 32
  %v1089 = vpop.permute.xlu0 %1088
  %1090 = vrot.lane.b32.xlu0 %v1067, 32
  %v1091 = vpop.permute.xlu0 %1090
  %v1100 = vsel %vm74, %v1077, 0.0
  %1101 = vadd.xlane.f32.xlu0 %v1100
  %v1102 = vpop.xlane.xlu0 %1101
  %v1103 = vsel %vm74, %v1079, 0.0
  %1104 = vadd.xlane.f32.xlu0 %v1103
  %v1105 = vpop.xlane.xlu0 %1104
  %v1106 = vsel %vm74, %v1081, 0.0
  %1107 = vadd.xlane.f32.xlu0 %v1106
  %v1108 = vpop.xlane.xlu0 %1107
  %v1109 = vsel %vm74, %v1083, 0.0
  %1110 = vadd.xlane.f32.xlu0 %v1109
  %v1111 = vpop.xlane.xlu0 %1110
  %v1112 = vsel %vm74, %v1085, 0.0
  %1113 = vadd.xlane.f32.xlu0 %v1112
  %v1114 = vpop.xlane.xlu0 %1113
  %v1115 = vsel %vm74, %v1087, 0.0
  %1116 = vadd.xlane.f32.xlu0 %v1115
  %v1117 = vpop.xlane.xlu0 %1116
  %v1118 = vsel %vm74, %v1089, 0.0
  %1119 = vadd.xlane.f32.xlu0 %v1118
  %v1120 = vpop.xlane.xlu0 %1119
  %v1121 = vsel %vm74, %v1091, 0.0
  %1122 = vadd.xlane.f32.xlu0 %v1121
  %v1123 = vpop.xlane.xlu0 %1122
  %v1124 = vlaneseq
  %v1125 = vshrl.u32 %v1124, 7
  %v1126 = vsub.s32 3, %v1125
  %v1127 = vrot.slane %v220, %v1126
  %v1128 = vadd.f32 %v1102, %v1127
  %v1129 = vadd.f32 %v1105, %v1127
  %v1130 = vadd.f32 %v1108, %v1127
  %v1131 = vadd.f32 %v1111, %v1127
  %v1132 = vadd.f32 %v1114, %v1127
  %v1133 = vadd.f32 %v1117, %v1127
  %v1134 = vadd.f32 %v1120, %v1127
  %v1135 = vadd.f32 %v1123, %v1127
  %v1136 = vmul.f32 %v1128, 0.2
  %v1137 = vmul.f32 %v1129, 0.2
  %v1138 = vmul.f32 %v1130, 0.2
  %v1139 = vmul.f32 %v1131, 0.2
  %v1140 = vmul.f32 %v1132, 0.2
  %v1141 = vmul.f32 %v1133, 0.2
  %v1142 = vmul.f32 %v1134, 0.2
  %v1143 = vmul.f32 %v1135, 0.2
  %v1144 = vmax.f32 %v1128, %v1136
  %v1145 = vmax.f32 %v1129, %v1137
  %v1146 = vmax.f32 %v1130, %v1138
  %v1147 = vmax.f32 %v1131, %v1139
  %v1148 = vmax.f32 %v1132, %v1140
  %v1149 = vmax.f32 %v1133, %v1141
  %v1150 = vmax.f32 %v1134, %v1142
  %v1151 = vmax.f32 %v1135, %v1143
  %v1152 = vadd.f32 %v1144, %v56
  %v1153 = vadd.f32 %v1145, %v57
  %v1154 = vadd.f32 %v1146, %v58
  %v1155 = vadd.f32 %v1147, %v59
  %v1156 = vadd.f32 %v1148, %v60
  %v1157 = vadd.f32 %v1149, %v61
  %v1158 = vadd.f32 %v1150, %v62
  %v1159 = vadd.f32 %v1151, %v63
  %v1160 = vsel %vm296, %v1152, -inf
  %1161 = vmax.xlane.f32.xlu0 %v1160
  %v1162 = vpop.xlane.xlu0 %1161
  %v1163 = vsel %vm296, %v1153, -inf
  %1164 = vmax.xlane.f32.xlu0 %v1163
  %v1165 = vpop.xlane.xlu0 %1164
  %v1166 = vsel %vm296, %v1154, -inf
  %1167 = vmax.xlane.f32.xlu0 %v1166
  %v1168 = vpop.xlane.xlu0 %1167
  %v1169 = vsel %vm296, %v1155, -inf
  %1170 = vmax.xlane.f32.xlu0 %v1169
  %v1171 = vpop.xlane.xlu0 %1170
  %v1172 = vsel %vm296, %v1156, -inf
  %1173 = vmax.xlane.f32.xlu0 %v1172
  %v1174 = vpop.xlane.xlu0 %1173
  %v1175 = vsel %vm296, %v1157, -inf
  %1176 = vmax.xlane.f32.xlu0 %v1175
  %v1177 = vpop.xlane.xlu0 %1176
  %v1178 = vsel %vm296, %v1158, -inf
  %1179 = vmax.xlane.f32.xlu0 %v1178
  %v1180 = vpop.xlane.xlu0 %1179
  %v1181 = vsel %vm296, %v1159, -inf
  %1182 = vmax.xlane.f32.xlu0 %v1181
  %v1183 = vpop.xlane.xlu0 %1182
  %v1184 = vsub.f32 %v1152, %v1162
  %v1185 = vsub.f32 %v1153, %v1165
  %v1186 = vsub.f32 %v1154, %v1168
  %v1187 = vsub.f32 %v1155, %v1171
  %v1188 = vsub.f32 %v1156, %v1174
  %v1189 = vsub.f32 %v1157, %v1177
  %v1190 = vsub.f32 %v1158, %v1180
  %v1191 = vsub.f32 %v1159, %v1183
  %v1192 = vmul.f32 %v1184, 1.442695
  %v1193 = vpow.pop %v1192
  %v1194 = vmul.f32 %v1185, 1.442695
  %v1195 = vpow.pop %v1194
  %v1196 = vmul.f32 %v1186, 1.442695
  %v1197 = vpow.pop %v1196
  %v1198 = vmul.f32 %v1187, 1.442695
  %v1199 = vpow.pop %v1198
  %v1200 = vmul.f32 %v1188, 1.442695
  %v1201 = vpow.pop %v1200
  %v1202 = vmul.f32 %v1189, 1.442695
  %v1203 = vpow.pop %v1202
  %v1204 = vmul.f32 %v1190, 1.442695
  %v1205 = vpow.pop %v1204
  %v1206 = vmul.f32 %v1191, 1.442695
  %v1207 = vpow.pop %v1206
  %v1208 = vsel %vm296, %v1193, 0.0
  %1209 = vadd.xlane.f32.xlu0 %v1208
  %v1210 = vpop.xlane.xlu0 %1209
  %v1211 = vsel %vm296, %v1195, 0.0
  %1212 = vadd.xlane.f32.xlu0 %v1211
  %v1213 = vpop.xlane.xlu0 %1212
  %v1214 = vsel %vm296, %v1197, 0.0
  %1215 = vadd.xlane.f32.xlu0 %v1214
  %v1216 = vpop.xlane.xlu0 %1215
  %v1217 = vsel %vm296, %v1199, 0.0
  %1218 = vadd.xlane.f32.xlu0 %v1217
  %v1219 = vpop.xlane.xlu0 %1218
  %v1220 = vsel %vm296, %v1201, 0.0
  %1221 = vadd.xlane.f32.xlu0 %v1220
  %v1222 = vpop.xlane.xlu0 %1221
  %v1223 = vsel %vm296, %v1203, 0.0
  %1224 = vadd.xlane.f32.xlu0 %v1223
  %v1225 = vpop.xlane.xlu0 %1224
  %v1226 = vsel %vm296, %v1205, 0.0
  %1227 = vadd.xlane.f32.xlu0 %v1226
  %v1228 = vpop.xlane.xlu0 %1227
  %v1229 = vsel %vm296, %v1207, 0.0
  %1230 = vadd.xlane.f32.xlu0 %v1229
  %v1231 = vpop.xlane.xlu0 %1230
  %v1232 = vrcp.pop %v1210
  %v1233 = vrcp.pop %v1213
  %v1234 = vrcp.pop %v1216
  %v1235 = vrcp.pop %v1219
  %v1236 = vrcp.pop %v1222
  %v1237 = vrcp.pop %v1225
  %v1238 = vrcp.pop %v1228
  %v1239 = vrcp.pop %v1231
  %v1240 = vmul.f32 %v1193, %v1232
  %v1241 = vmul.f32 %v1195, %v1233
  %v1242 = vmul.f32 %v1197, %v1234
  %v1243 = vmul.f32 %v1199, %v1235
  %v1244 = vmul.f32 %v1201, %v1236
  %v1245 = vmul.f32 %v1203, %v1237
  %v1246 = vmul.f32 %v1205, %v1238
  %v1247 = vmul.f32 %v1207, %v1239
  %v1248 = vpack.c.bf16 %v1241, %v1240
  %v1249 = vpack.c.bf16 %v1243, %v1242
  %v1250 = vpack.c.bf16 %v1245, %v1244
  %v1251 = vpack.c.bf16 %v1247, %v1246
  %1252 = vrot.lane.b32.xlu0 %v389, 32
  %v1253 = vpop.permute.xlu0 %1252
  %1254 = vrot.lane.b32.xlu0 %v390, 32
  %v1255 = vpop.permute.xlu0 %1254
  %1256 = vrot.lane.b32.xlu0 %v391, 32
  %v1257 = vpop.permute.xlu0 %1256
  %1258 = vrot.lane.b32.xlu0 %v392, 32
  %v1259 = vpop.permute.xlu0 %1258
  %v1265 = vsel %vm296, %v1248, 0
  %v1268 = vsel %vm296, %v1249, 0
  %v1271 = vsel %vm296, %v1250, 0
  %v1274 = vsel %vm296, %v1251, 0
  %1276 = vmatprep.subr.bf16.mxu0 0
  %1277 = vmatpush1.bf16.msra.mxu0 %v1253
  %1278 = vmatprep.subr.bf16.mxu0 0
  %1279 = vmatpush1.bf16.msra.mxu0 %v1255
  %1280 = vmatprep.subr.bf16.mxu0 0
  %1281 = vmatpush1.bf16.msra.mxu0 %v1257
  %1282 = vmatprep.subr.bf16.mxu0 0
  %1283 = vmatpush1.bf16.msra.mxu0 %v1259
  %1284 = vmatprep.subr.bf16.mxu0 0
  %1285 = vmatpush1.bf16.msra.mxu0 0
  %1286 = vmatprep.subr.bf16.mxu0 0
  %1287 = vmatpush1.bf16.msra.mxu0 0
  %1288 = vmatprep.subr.bf16.mxu0 0
  %1289 = vmatpush1.bf16.msra.mxu0 0
  %1290 = vmatprep.subr.bf16.mxu0 0
  %1291 = vmatpush1.bf16.msra.mxu0 0
  %1292 = vmatprep.subr.bf16.mxu0 0
  %1293 = vmatpush1.bf16.msra.mxu0 0
  %1294 = vmatprep.subr.bf16.mxu0 0
  %1295 = vmatpush1.bf16.msra.mxu0 0
  %1296 = vmatprep.subr.bf16.mxu0 0
  %1297 = vmatpush1.bf16.msra.mxu0 0
  %1298 = vmatprep.subr.bf16.mxu0 0
  %1299 = vmatpush1.bf16.msra.mxu0 0
  %1300 = vmatprep.subr.bf16.mxu0 0
  %1301 = vmatpush1.bf16.msra.mxu0 0
  %1302 = vmatprep.subr.bf16.mxu0 0
  %1303 = vmatpush1.bf16.msra.mxu0 0
  %1304 = vmatprep.subr.bf16.mxu0 0
  %1305 = vmatpush1.bf16.msra.mxu0 0
  %1306 = vmatprep.subr.bf16.mxu0 0
  %1307 = vmatpush1.bf16.msra.mxu0 0
  %1308 = vmatprep.mubr.bf16.mxu0 0
  %1309 = vmatmul.mubr.bf16.gmra.mrb[0].mxu0 %v1265
  %v1310 = vpop.f32.mrb[0].mxu0
  %v1311 = vadd.f32 0.0, %v1310
  %v1312 = vpop.f32.mrb[0].mxu0
  %v1313 = vpop.f32.mrb[0].mxu0
  %v1314 = vadd.f32 0.0, %v1313
  %v1315 = vpop.f32.mrb[0].mxu0
  %1316 = vmatprep.mubr.bf16.mxu0 0
  %1317 = vmatmul.mubr.bf16.gmra.mrb[0].mxu0 %v1268
  %v1318 = vpop.f32.mrb[0].mxu0
  %v1319 = vadd.f32 0.0, %v1318
  %v1320 = vpop.f32.mrb[0].mxu0
  %v1321 = vpop.f32.mrb[0].mxu0
  %v1322 = vadd.f32 0.0, %v1321
  %v1323 = vpop.f32.mrb[0].mxu0
  %1324 = vmatprep.mubr.bf16.mxu0 0
  %1325 = vmatmul.mubr.bf16.gmra.mrb[0].mxu0 %v1271
  %v1326 = vpop.f32.mrb[0].mxu0
  %v1327 = vadd.f32 0.0, %v1326
  %v1328 = vpop.f32.mrb[0].mxu0
  %v1329 = vpop.f32.mrb[0].mxu0
  %v1330 = vadd.f32 0.0, %v1329
  %v1331 = vpop.f32.mrb[0].mxu0
  %1332 = vmatprep.mubr.bf16.mxu0 0
  %1333 = vmatmul.mubr.bf16.gmra.mrb[0].mxu0 %v1274
  %v1334 = vpop.f32.mrb[0].mxu0
  %v1335 = vadd.f32 0.0, %v1334
  %v1336 = vpop.f32.mrb[0].mxu0
  %v1337 = vpop.f32.mrb[0].mxu0
  %v1338 = vadd.f32 0.0, %v1337
  %v1339 = vpop.f32.mrb[0].mxu0
  %1340 = vdwg.mxu0
  %1349 = vrot.lane.b32.xlu0 %v733, 32
  %v1350 = vpop.permute.xlu0 %1349
  %1351 = vrot.lane.b32.xlu0 %v736, 32
  %v1352 = vpop.permute.xlu0 %1351
  %1353 = vrot.lane.b32.xlu0 %v741, 32
  %v1354 = vpop.permute.xlu0 %1353
  %1355 = vrot.lane.b32.xlu0 %v744, 32
  %v1356 = vpop.permute.xlu0 %1355
  %1357 = vrot.lane.b32.xlu0 %v749, 32
  %v1358 = vpop.permute.xlu0 %1357
  %1359 = vrot.lane.b32.xlu0 %v752, 32
  %v1360 = vpop.permute.xlu0 %1359
  %1361 = vrot.lane.b32.xlu0 %v757, 32
  %v1362 = vpop.permute.xlu0 %1361
  %1363 = vrot.lane.b32.xlu0 %v760, 32
  %v1364 = vpop.permute.xlu0 %1363
  %1381 = vrot.lane.b32.xlu0 %v1022, 64
  %v1382 = vpop.permute.xlu0 %1381
  %1383 = vrot.lane.b32.xlu0 %v1025, 64
  %v1384 = vpop.permute.xlu0 %1383
  %1385 = vrot.lane.b32.xlu0 %v1030, 64
  %v1386 = vpop.permute.xlu0 %1385
  %1387 = vrot.lane.b32.xlu0 %v1033, 64
  %v1388 = vpop.permute.xlu0 %1387
  %1389 = vrot.lane.b32.xlu0 %v1038, 64
  %v1390 = vpop.permute.xlu0 %1389
  %1391 = vrot.lane.b32.xlu0 %v1041, 64
  %v1392 = vpop.permute.xlu0 %1391
  %1393 = vrot.lane.b32.xlu0 %v1046, 64
  %v1394 = vpop.permute.xlu0 %1393
  %1395 = vrot.lane.b32.xlu0 %v1049, 64
  %v1396 = vpop.permute.xlu0 %1395
  %1413 = vrot.lane.b32.xlu0 %v1311, 96
  %v1414 = vpop.permute.xlu0 %1413
  %1415 = vrot.lane.b32.xlu0 %v1314, 96
  %v1416 = vpop.permute.xlu0 %1415
  %1417 = vrot.lane.b32.xlu0 %v1319, 96
  %v1418 = vpop.permute.xlu0 %1417
  %1419 = vrot.lane.b32.xlu0 %v1322, 96
  %v1420 = vpop.permute.xlu0 %1419
  %1421 = vrot.lane.b32.xlu0 %v1327, 96
  %v1422 = vpop.permute.xlu0 %1421
  %1423 = vrot.lane.b32.xlu0 %v1330, 96
  %v1424 = vpop.permute.xlu0 %1423
  %1425 = vrot.lane.b32.xlu0 %v1335, 96
  %v1426 = vpop.permute.xlu0 %1425
  %1427 = vrot.lane.b32.xlu0 %v1338, 96
  %v1428 = vpop.permute.xlu0 %1427
  %v1437 = vsel %vm74, %v440, %v1350
  %v1438 = vsel %vm74, %v443, %v1352
  %v1439 = vsel %vm74, %v448, %v1354
  %v1440 = vsel %vm74, %v451, %v1356
  %v1441 = vsel %vm74, %v456, %v1358
  %v1442 = vsel %vm74, %v459, %v1360
  %v1443 = vsel %vm74, %v464, %v1362
  %v1444 = vsel %vm74, %v467, %v1364
  %v1445 = vsel %vm296, %v1437, %v1382
  %v1446 = vsel %vm296, %v1438, %v1384
  %v1447 = vsel %vm296, %v1439, %v1386
  %v1448 = vsel %vm296, %v1440, %v1388
  %v1449 = vsel %vm296, %v1441, %v1390
  %v1450 = vsel %vm296, %v1442, %v1392
  %v1451 = vsel %vm296, %v1443, %v1394
  %v1452 = vsel %vm296, %v1444, %v1396
  %vm1453 = vcmask 785408
  %v1454 = vsel %vm1453, %v1445, %v1414
  %v1455 = vsel %vm1453, %v1446, %v1416
  %v1456 = vsel %vm1453, %v1447, %v1418
  %v1457 = vsel %vm1453, %v1448, %v1420
  %v1458 = vsel %vm1453, %v1449, %v1422
  %v1459 = vsel %vm1453, %v1450, %v1424
  %v1460 = vsel %vm1453, %v1451, %v1426
  %v1461 = vsel %vm1453, %v1452, %v1428
  %v1462 = vld [vmem:[%s5] sm:$0x1]
  %v1464 = vlaneseq
  %v1465 = vshrl.u32 %v1464, 7
  %v1466 = vsub.s32 0, %v1465
  %v1467 = vrot.slane %v1462, %v1466
  %v1469 = vadd.f32 %v1454, %v1467
  %v1470 = vadd.f32 %v1455, %v1467
  %v1471 = vadd.f32 %v1456, %v1467
  %v1472 = vadd.f32 %v1457, %v1467
  %v1473 = vadd.f32 %v1458, %v1467
  %v1474 = vadd.f32 %v1459, %v1467
  %v1475 = vadd.f32 %v1460, %v1467
  %v1476 = vadd.f32 %v1461, %v1467
  %v1477 = vld [vmem:[%s6] sm:$0x1]
  %v1478 = vld [vmem:[%s7] sm:$0x1]
  %1479 = vadd.xlane.f32.xlu0 %v1469
  %v1480 = vpop.xlane.xlu0 %1479
  %1481 = vadd.xlane.f32.xlu0 %v1470
  %v1482 = vpop.xlane.xlu0 %1481
  %1483 = vadd.xlane.f32.xlu0 %v1471
  %v1484 = vpop.xlane.xlu0 %1483
  %1485 = vadd.xlane.f32.xlu0 %v1472
  %v1486 = vpop.xlane.xlu0 %1485
  %1487 = vadd.xlane.f32.xlu0 %v1473
  %v1488 = vpop.xlane.xlu0 %1487
  %1489 = vadd.xlane.f32.xlu0 %v1474
  %v1490 = vpop.xlane.xlu0 %1489
  %1491 = vadd.xlane.f32.xlu0 %v1475
  %v1492 = vpop.xlane.xlu0 %1491
  %1493 = vadd.xlane.f32.xlu0 %v1476
  %v1494 = vpop.xlane.xlu0 %1493
  %v1495 = vrcp.pop 128.0
  %v1496 = vmul.f32 %v1480, %v1495
  %v1497 = vmul.f32 %v1482, %v1495
  %v1498 = vmul.f32 %v1484, %v1495
  %v1499 = vmul.f32 %v1486, %v1495
  %v1500 = vmul.f32 %v1488, %v1495
  %v1501 = vmul.f32 %v1490, %v1495
  %v1502 = vmul.f32 %v1492, %v1495
  %v1503 = vmul.f32 %v1494, %v1495
  %v1504 = vsub.f32 %v1469, %v1496
  %v1505 = vsub.f32 %v1470, %v1497
  %v1506 = vsub.f32 %v1471, %v1498
  %v1507 = vsub.f32 %v1472, %v1499
  %v1508 = vsub.f32 %v1473, %v1500
  %v1509 = vsub.f32 %v1474, %v1501
  %v1510 = vsub.f32 %v1475, %v1502
  %v1511 = vsub.f32 %v1476, %v1503
  %v1512 = vmul.f32 %v1504, %v1504
  %v1513 = vmul.f32 %v1505, %v1505
  %v1514 = vmul.f32 %v1506, %v1506
  %v1515 = vmul.f32 %v1507, %v1507
  %v1516 = vmul.f32 %v1508, %v1508
  %v1517 = vmul.f32 %v1509, %v1509
  %v1518 = vmul.f32 %v1510, %v1510
  %v1519 = vmul.f32 %v1511, %v1511
  %1520 = vadd.xlane.f32.xlu0 %v1512
  %v1521 = vpop.xlane.xlu0 %1520
  %1522 = vadd.xlane.f32.xlu0 %v1513
  %v1523 = vpop.xlane.xlu0 %1522
  %1524 = vadd.xlane.f32.xlu0 %v1514
  %v1525 = vpop.xlane.xlu0 %1524
  %1526 = vadd.xlane.f32.xlu0 %v1515
  %v1527 = vpop.xlane.xlu0 %1526
  %1528 = vadd.xlane.f32.xlu0 %v1516
  %v1529 = vpop.xlane.xlu0 %1528
  %1530 = vadd.xlane.f32.xlu0 %v1517
  %v1531 = vpop.xlane.xlu0 %1530
  %1532 = vadd.xlane.f32.xlu0 %v1518
  %v1533 = vpop.xlane.xlu0 %1532
  %1534 = vadd.xlane.f32.xlu0 %v1519
  %v1535 = vpop.xlane.xlu0 %1534
  %v1536 = vmul.f32 %v1521, %v1495
  %v1537 = vmul.f32 %v1523, %v1495
  %v1538 = vmul.f32 %v1525, %v1495
  %v1539 = vmul.f32 %v1527, %v1495
  %v1540 = vmul.f32 %v1529, %v1495
  %v1541 = vmul.f32 %v1531, %v1495
  %v1542 = vmul.f32 %v1533, %v1495
  %v1543 = vmul.f32 %v1535, %v1495
  %v1544 = vadd.f32 %v1536, 1e-05
  %v1545 = vadd.f32 %v1537, 1e-05
  %v1546 = vadd.f32 %v1538, 1e-05
  %v1547 = vadd.f32 %v1539, 1e-05
  %v1548 = vadd.f32 %v1540, 1e-05
  %v1549 = vadd.f32 %v1541, 1e-05
  %v1550 = vadd.f32 %v1542, 1e-05
  %v1551 = vadd.f32 %v1543, 1e-05
  %v1552 = vrsqrt.pop %v1544
  %v1553 = vrsqrt.pop %v1545
  %v1554 = vrsqrt.pop %v1546
  %v1555 = vrsqrt.pop %v1547
  %v1556 = vrsqrt.pop %v1548
  %v1557 = vrsqrt.pop %v1549
  %v1558 = vrsqrt.pop %v1550
  %v1559 = vrsqrt.pop %v1551
  %v1560 = vmul.f32 %v1504, %v1552
  %v1561 = vmul.f32 %v1505, %v1553
  %v1562 = vmul.f32 %v1506, %v1554
  %v1563 = vmul.f32 %v1507, %v1555
  %v1564 = vmul.f32 %v1508, %v1556
  %v1565 = vmul.f32 %v1509, %v1557
  %v1566 = vmul.f32 %v1510, %v1558
  %v1567 = vmul.f32 %v1511, %v1559
  %v1569 = vlaneseq
  %v1570 = vshrl.u32 %v1569, 7
  %v1571 = vsub.s32 0, %v1570
  %v1572 = vrot.slane %v1477, %v1571
  %v1574 = vmul.f32 %v1560, %v1572
  %v1575 = vmul.f32 %v1561, %v1572
  %v1576 = vmul.f32 %v1562, %v1572
  %v1577 = vmul.f32 %v1563, %v1572
  %v1578 = vmul.f32 %v1564, %v1572
  %v1579 = vmul.f32 %v1565, %v1572
  %v1580 = vmul.f32 %v1566, %v1572
  %v1581 = vmul.f32 %v1567, %v1572
  %v1583 = vlaneseq
  %v1584 = vshrl.u32 %v1583, 7
  %v1585 = vsub.s32 0, %v1584
  %v1586 = vrot.slane %v1478, %v1585
  %v1588 = vadd.f32 %v1574, %v1586
  %v1589 = vadd.f32 %v1575, %v1586
  %v1590 = vadd.f32 %v1576, %v1586
  %v1591 = vadd.f32 %v1577, %v1586
  %v1592 = vadd.f32 %v1578, %v1586
  %v1593 = vadd.f32 %v1579, %v1586
  %v1594 = vadd.f32 %v1580, %v1586
  %v1595 = vadd.f32 %v1581, %v1586
  %v1596 = vmax.f32 %v1588, 0.0
  %v1597 = vmax.f32 %v1589, 0.0
  %v1598 = vmax.f32 %v1590, 0.0
  %v1599 = vmax.f32 %v1591, 0.0
  %v1600 = vmax.f32 %v1592, 0.0
  %v1601 = vmax.f32 %v1593, 0.0
  %v1602 = vmax.f32 %v1594, 0.0
  %v1603 = vmax.f32 %v1595, 0.0
  %v1604 = vpack.c.bf16 %v1597, %v1596
  %v1605 = vpack.c.bf16 %v1599, %v1598
  %v1606 = vpack.c.bf16 %v1601, %v1600
  %v1607 = vpack.c.bf16 %v1603, %v1602
  %v1608 = vld [vmem:[%s8] sm:$0xff]
  %v1609 = vld [vmem:[%s8 + $0x8] sm:$0xff]
  %v1610 = vld [vmem:[%s8 + $0x10] sm:$0xff]
  %v1611 = vld [vmem:[%s8 + $0x18] sm:$0xff]
  %v1612 = vld [vmem:[%s8 + $0x20] sm:$0xff]
  %v1613 = vld [vmem:[%s8 + $0x28] sm:$0xff]
  %v1614 = vld [vmem:[%s8 + $0x30] sm:$0xff]
  %v1615 = vld [vmem:[%s8 + $0x38] sm:$0xff]
  %v1616 = vld [vmem:[%s8 + $0x40] sm:$0xff]
  %v1617 = vld [vmem:[%s8 + $0x48] sm:$0xff]
  %v1618 = vld [vmem:[%s8 + $0x50] sm:$0xff]
  %v1619 = vld [vmem:[%s8 + $0x58] sm:$0xff]
  %v1620 = vld [vmem:[%s8 + $0x60] sm:$0xff]
  %v1621 = vld [vmem:[%s8 + $0x68] sm:$0xff]
  %v1622 = vld [vmem:[%s8 + $0x70] sm:$0xff]
  %v1623 = vld [vmem:[%s8 + $0x78] sm:$0xff]
  %v1624 = vpack.c.bf16 %v1609, %v1608
  %v1625 = vpack.c.bf16 %v1611, %v1610
  %v1626 = vpack.c.bf16 %v1613, %v1612
  %v1627 = vpack.c.bf16 %v1615, %v1614
  %v1628 = vpack.c.bf16 %v1617, %v1616
  %v1629 = vpack.c.bf16 %v1619, %v1618
  %v1630 = vpack.c.bf16 %v1621, %v1620
  %v1631 = vpack.c.bf16 %v1623, %v1622
  %1632 = vmatprep.subr.bf16.mxu0 0
  %1633 = vmatpush1.bf16.msra.mxu0 %v1624
  %1634 = vmatprep.subr.bf16.mxu0 0
  %1635 = vmatpush1.bf16.msra.mxu0 %v1625
  %1636 = vmatprep.subr.bf16.mxu0 0
  %1637 = vmatpush1.bf16.msra.mxu0 %v1626
  %1638 = vmatprep.subr.bf16.mxu0 0
  %1639 = vmatpush1.bf16.msra.mxu0 %v1627
  %1640 = vmatprep.subr.bf16.mxu0 0
  %1641 = vmatpush1.bf16.msra.mxu0 %v1628
  %1642 = vmatprep.subr.bf16.mxu0 0
  %1643 = vmatpush1.bf16.msra.mxu0 %v1629
  %1644 = vmatprep.subr.bf16.mxu0 0
  %1645 = vmatpush1.bf16.msra.mxu0 %v1630
  %1646 = vmatprep.subr.bf16.mxu0 0
  %1647 = vmatpush1.bf16.msra.mxu0 %v1631
  %1648 = vmatprep.subr.bf16.mxu0 0
  %1649 = vmatpush1.bf16.msra.mxu0 0
  %1650 = vmatprep.subr.bf16.mxu0 0
  %1651 = vmatpush1.bf16.msra.mxu0 0
  %1652 = vmatprep.subr.bf16.mxu0 0
  %1653 = vmatpush1.bf16.msra.mxu0 0
  %1654 = vmatprep.subr.bf16.mxu0 0
  %1655 = vmatpush1.bf16.msra.mxu0 0
  %1656 = vmatprep.subr.bf16.mxu0 0
  %1657 = vmatpush1.bf16.msra.mxu0 0
  %1658 = vmatprep.subr.bf16.mxu0 0
  %1659 = vmatpush1.bf16.msra.mxu0 0
  %1660 = vmatprep.subr.bf16.mxu0 0
  %1661 = vmatpush1.bf16.msra.mxu0 0
  %1662 = vmatprep.subr.bf16.mxu0 0
  %1663 = vmatpush1.bf16.msra.mxu0 0
  %1664 = vmatprep.mubr.bf16.mxu0 0
  %1665 = vmatmul.mubr.bf16.gmra.mrb[0].mxu0 %v1604
  %v1666 = vpop.f32.mrb[0].mxu0
  %v1667 = vadd.f32 0.0, %v1666
  %v1668 = vpop.f32.mrb[0].mxu0
  %v1669 = vpop.f32.mrb[0].mxu0
  %v1670 = vadd.f32 0.0, %v1669
  %v1671 = vpop.f32.mrb[0].mxu0
  %1672 = vmatprep.mubr.bf16.mxu0 0
  %1673 = vmatmul.mubr.bf16.gmra.mrb[0].mxu0 %v1605
  %v1674 = vpop.f32.mrb[0].mxu0
  %v1675 = vadd.f32 0.0, %v1674
  %v1676 = vpop.f32.mrb[0].mxu0
  %v1677 = vpop.f32.mrb[0].mxu0
  %v1678 = vadd.f32 0.0, %v1677
  %v1679 = vpop.f32.mrb[0].mxu0
  %1680 = vmatprep.mubr.bf16.mxu0 0
  %1681 = vmatmul.mubr.bf16.gmra.mrb[0].mxu0 %v1606
  %v1682 = vpop.f32.mrb[0].mxu0
  %v1683 = vadd.f32 0.0, %v1682
  %v1684 = vpop.f32.mrb[0].mxu0
  %v1685 = vpop.f32.mrb[0].mxu0
  %v1686 = vadd.f32 0.0, %v1685
  %v1687 = vpop.f32.mrb[0].mxu0
  %1688 = vmatprep.mubr.bf16.mxu0 0
  %1689 = vmatmul.mubr.bf16.gmra.mrb[0].mxu0 %v1607
  %v1690 = vpop.f32.mrb[0].mxu0
  %v1691 = vadd.f32 0.0, %v1690
  %v1692 = vpop.f32.mrb[0].mxu0
  %v1693 = vpop.f32.mrb[0].mxu0
  %v1694 = vadd.f32 0.0, %v1693
  %v1695 = vpop.f32.mrb[0].mxu0
  %1696 = vdwg.mxu0
  %v1697 = vld [vmem:[%s9] sm:$0x1]
  %v1699 = vsel %vm74, %v1697, 0
  %v1702 = vsel %vm74, %v1667, 0
  %v1705 = vsel %vm74, %v1670, 0
  %v1708 = vsel %vm74, %v1675, 0
  %v1711 = vsel %vm74, %v1678, 0
  %v1714 = vsel %vm74, %v1683, 0
  %v1717 = vsel %vm74, %v1686, 0
  %v1720 = vsel %vm74, %v1691, 0
  %v1723 = vsel %vm74, %v1694, 0
  %1725 = vmatprep.subr.mxu0 0.0
  %1726 = vmatpush1.xpose.msra.mxu0 %v1702
  %1727 = vmatprep.subr.mxu0 0.0
  %1728 = vmatpush1.xpose.msra.mxu0 %v1705
  %1729 = vmatprep.subr.mxu0 0.0
  %1730 = vmatpush1.xpose.msra.mxu0 %v1708
  %1731 = vmatprep.subr.mxu0 0.0
  %1732 = vmatpush1.xpose.msra.mxu0 %v1711
  %1733 = vmatprep.subr.mxu0 0.0
  %1734 = vmatpush1.xpose.msra.mxu0 %v1714
  %1735 = vmatprep.subr.mxu0 0.0
  %1736 = vmatpush1.xpose.msra.mxu0 %v1717
  %1737 = vmatprep.subr.mxu0 0.0
  %1738 = vmatpush1.xpose.msra.mxu0 %v1720
  %1739 = vmatprep.subr.mxu0 0.0
  %1740 = vmatpush1.xpose.msra.mxu0 %v1723
  %1741 = vmatprep.subr.mxu0 0.0
  %1742 = vmatpush1.xpose.msra.mxu0 0.0
  %1743 = vmatprep.subr.mxu0 0.0
  %1744 = vmatpush1.xpose.msra.mxu0 0.0
  %1745 = vmatprep.subr.mxu0 0.0
  %1746 = vmatpush1.xpose.msra.mxu0 0.0
  %1747 = vmatprep.subr.mxu0 0.0
  %1748 = vmatpush1.xpose.msra.mxu0 0.0
  %1749 = vmatprep.subr.mxu0 0.0
  %1750 = vmatpush1.xpose.msra.mxu0 0.0
  %1751 = vmatprep.subr.mxu0 0.0
  %1752 = vmatpush1.xpose.msra.mxu0 0.0
  %1753 = vmatprep.subr.mxu0 0.0
  %1754 = vmatpush1.xpose.msra.mxu0 0.0
  %1755 = vmatprep.subr.mxu0 0.0
  %1756 = vmatpush1.xpose.msra.mxu0 0.0
  %1757 = vmatprep.subr.mxu0 0.0
  %1758 = vmatpush1.xpose.msra.mxu0 0.0
  %1759 = vmatprep.subr.mxu0 0.0
  %1760 = vmatpush1.xpose.msra.mxu0 0.0
  %1761 = vmatprep.subr.mxu0 0.0
  %1762 = vmatpush1.xpose.msra.mxu0 0.0
  %1763 = vmatprep.subr.mxu0 0.0
  %1764 = vmatpush1.xpose.msra.mxu0 0.0
  %1765 = vmatprep.subr.mxu0 0.0
  %1766 = vmatpush1.xpose.msra.mxu0 0.0
  %1767 = vmatprep.subr.mxu0 0.0
  %1768 = vmatpush1.xpose.msra.mxu0 0.0
  %1769 = vmatprep.subr.mxu0 0.0
  %1770 = vmatpush1.xpose.msra.mxu0 0.0
  %1771 = vmatprep.subr.mxu0 0.0
  %1772 = vmatpush1.xpose.msra.mxu0 0.0
  %1773 = vmatprep.subr.mxu0 0.0
  %1774 = vmatpush1.xpose.msra.mxu0 0.0
  %1775 = vmatprep.subr.mxu0 0.0
  %1776 = vmatpush1.xpose.msra.mxu0 0.0
  %1777 = vmatprep.subr.mxu0 0.0
  %1778 = vmatpush1.xpose.msra.mxu0 0.0
  %1779 = vmatprep.subr.mxu0 0.0
  %1780 = vmatpush1.xpose.msra.mxu0 0.0
  %1781 = vmatprep.subr.mxu0 0.0
  %1782 = vmatpush1.xpose.msra.mxu0 0.0
  %1783 = vmatprep.subr.mxu0 0.0
  %1784 = vmatpush1.xpose.msra.mxu0 0.0
  %1785 = vmatprep.subr.mxu0 0.0
  %1786 = vmatpush1.xpose.msra.mxu0 0.0
  %1787 = vmatprep.subr.mxu0 0.0
  %1788 = vmatpush1.xpose.msra.mxu0 0.0
  %1789 = vmatprep.mubr.f32.mxu0 0.0
  %1790 = vmatmul.mubr.f32.gmra.mrb[0].mxu0 %v1699
  %v1791 = vpop.f32.mrb[0].mxu0
  %v1792 = vadd.f32 0.0, %v1791
  %v1793 = vpop.f32.mrb[0].mxu0
  %1794 = vdwg.mxu0
  %v1795 = vld [vmem:[%s10] sm:$0x1]
  %v1797 = vlaneseq
  %v1798 = vshrl.u32 %v1797, 7
  %v1799 = vsub.s32 0, %v1798
  %v1800 = vrot.slane %v1795, %v1799
  %v1802 = vmul.f32 %v1667, %v1800
  %v1803 = vmul.f32 %v1670, %v1800
  %v1804 = vmul.f32 %v1675, %v1800
  %v1805 = vmul.f32 %v1678, %v1800
  %v1806 = vmul.f32 %v1683, %v1800
  %v1807 = vmul.f32 %v1686, %v1800
  %v1808 = vmul.f32 %v1691, %v1800
  %v1809 = vmul.f32 %v1694, %v1800
  %v1810 = vsel %vm74, %v1802, 0.0
  %1811 = vadd.xlane.f32.xlu0 %v1810
  %v1812 = vpop.xlane.xlu0 %1811
  %v1813 = vsel %vm74, %v1803, 0.0
  %1814 = vadd.xlane.f32.xlu0 %v1813
  %v1815 = vpop.xlane.xlu0 %1814
  %v1816 = vsel %vm74, %v1804, 0.0
  %1817 = vadd.xlane.f32.xlu0 %v1816
  %v1818 = vpop.xlane.xlu0 %1817
  %v1819 = vsel %vm74, %v1805, 0.0
  %1820 = vadd.xlane.f32.xlu0 %v1819
  %v1821 = vpop.xlane.xlu0 %1820
  %v1822 = vsel %vm74, %v1806, 0.0
  %1823 = vadd.xlane.f32.xlu0 %v1822
  %v1824 = vpop.xlane.xlu0 %1823
  %v1825 = vsel %vm74, %v1807, 0.0
  %1826 = vadd.xlane.f32.xlu0 %v1825
  %v1827 = vpop.xlane.xlu0 %1826
  %v1828 = vsel %vm74, %v1808, 0.0
  %1829 = vadd.xlane.f32.xlu0 %v1828
  %v1830 = vpop.xlane.xlu0 %1829
  %v1831 = vsel %vm74, %v1809, 0.0
  %1832 = vadd.xlane.f32.xlu0 %v1831
  %v1833 = vpop.xlane.xlu0 %1832
  %v1834 = vlaneseq
  %v1835 = vshrl.u32 %v1834, 7
  %v1836 = vsub.s32 0, %v1835
  %v1837 = vrot.slane %v1792, %v1836
  %v1838 = vadd.f32 %v1812, %v1837
  %v1839 = vadd.f32 %v1815, %v1837
  %v1840 = vadd.f32 %v1818, %v1837
  %v1841 = vadd.f32 %v1821, %v1837
  %v1842 = vadd.f32 %v1824, %v1837
  %v1843 = vadd.f32 %v1827, %v1837
  %v1844 = vadd.f32 %v1830, %v1837
  %v1845 = vadd.f32 %v1833, %v1837
  %v1846 = vmul.f32 %v1838, 0.2
  %v1847 = vmul.f32 %v1839, 0.2
  %v1848 = vmul.f32 %v1840, 0.2
  %v1849 = vmul.f32 %v1841, 0.2
  %v1850 = vmul.f32 %v1842, 0.2
  %v1851 = vmul.f32 %v1843, 0.2
  %v1852 = vmul.f32 %v1844, 0.2
  %v1853 = vmul.f32 %v1845, 0.2
  %v1854 = vmax.f32 %v1838, %v1846
  %v1855 = vmax.f32 %v1839, %v1847
  %v1856 = vmax.f32 %v1840, %v1848
  %v1857 = vmax.f32 %v1841, %v1849
  %v1858 = vmax.f32 %v1842, %v1850
  %v1859 = vmax.f32 %v1843, %v1851
  %v1860 = vmax.f32 %v1844, %v1852
  %v1861 = vmax.f32 %v1845, %v1853
  %v1862 = vadd.f32 %v1854, %v56
  %v1863 = vadd.f32 %v1855, %v57
  %v1864 = vadd.f32 %v1856, %v58
  %v1865 = vadd.f32 %v1857, %v59
  %v1866 = vadd.f32 %v1858, %v60
  %v1867 = vadd.f32 %v1859, %v61
  %v1868 = vadd.f32 %v1860, %v62
  %v1869 = vadd.f32 %v1861, %v63
  %v1870 = vsel %vm296, %v1862, -inf
  %1871 = vmax.xlane.f32.xlu0 %v1870
  %v1872 = vpop.xlane.xlu0 %1871
  %v1873 = vsel %vm296, %v1863, -inf
  %1874 = vmax.xlane.f32.xlu0 %v1873
  %v1875 = vpop.xlane.xlu0 %1874
  %v1876 = vsel %vm296, %v1864, -inf
  %1877 = vmax.xlane.f32.xlu0 %v1876
  %v1878 = vpop.xlane.xlu0 %1877
  %v1879 = vsel %vm296, %v1865, -inf
  %1880 = vmax.xlane.f32.xlu0 %v1879
  %v1881 = vpop.xlane.xlu0 %1880
  %v1882 = vsel %vm296, %v1866, -inf
  %1883 = vmax.xlane.f32.xlu0 %v1882
  %v1884 = vpop.xlane.xlu0 %1883
  %v1885 = vsel %vm296, %v1867, -inf
  %1886 = vmax.xlane.f32.xlu0 %v1885
  %v1887 = vpop.xlane.xlu0 %1886
  %v1888 = vsel %vm296, %v1868, -inf
  %1889 = vmax.xlane.f32.xlu0 %v1888
  %v1890 = vpop.xlane.xlu0 %1889
  %v1891 = vsel %vm296, %v1869, -inf
  %1892 = vmax.xlane.f32.xlu0 %v1891
  %v1893 = vpop.xlane.xlu0 %1892
  %v1894 = vsub.f32 %v1862, %v1872
  %v1895 = vsub.f32 %v1863, %v1875
  %v1896 = vsub.f32 %v1864, %v1878
  %v1897 = vsub.f32 %v1865, %v1881
  %v1898 = vsub.f32 %v1866, %v1884
  %v1899 = vsub.f32 %v1867, %v1887
  %v1900 = vsub.f32 %v1868, %v1890
  %v1901 = vsub.f32 %v1869, %v1893
  %v1902 = vmul.f32 %v1894, 1.442695
  %v1903 = vpow.pop %v1902
  %v1904 = vmul.f32 %v1895, 1.442695
  %v1905 = vpow.pop %v1904
  %v1906 = vmul.f32 %v1896, 1.442695
  %v1907 = vpow.pop %v1906
  %v1908 = vmul.f32 %v1897, 1.442695
  %v1909 = vpow.pop %v1908
  %v1910 = vmul.f32 %v1898, 1.442695
  %v1911 = vpow.pop %v1910
  %v1912 = vmul.f32 %v1899, 1.442695
  %v1913 = vpow.pop %v1912
  %v1914 = vmul.f32 %v1900, 1.442695
  %v1915 = vpow.pop %v1914
  %v1916 = vmul.f32 %v1901, 1.442695
  %v1917 = vpow.pop %v1916
  %v1918 = vsel %vm296, %v1903, 0.0
  %1919 = vadd.xlane.f32.xlu0 %v1918
  %v1920 = vpop.xlane.xlu0 %1919
  %v1921 = vsel %vm296, %v1905, 0.0
  %1922 = vadd.xlane.f32.xlu0 %v1921
  %v1923 = vpop.xlane.xlu0 %1922
  %v1924 = vsel %vm296, %v1907, 0.0
  %1925 = vadd.xlane.f32.xlu0 %v1924
  %v1926 = vpop.xlane.xlu0 %1925
  %v1927 = vsel %vm296, %v1909, 0.0
  %1928 = vadd.xlane.f32.xlu0 %v1927
  %v1929 = vpop.xlane.xlu0 %1928
  %v1930 = vsel %vm296, %v1911, 0.0
  %1931 = vadd.xlane.f32.xlu0 %v1930
  %v1932 = vpop.xlane.xlu0 %1931
  %v1933 = vsel %vm296, %v1913, 0.0
  %1934 = vadd.xlane.f32.xlu0 %v1933
  %v1935 = vpop.xlane.xlu0 %1934
  %v1936 = vsel %vm296, %v1915, 0.0
  %1937 = vadd.xlane.f32.xlu0 %v1936
  %v1938 = vpop.xlane.xlu0 %1937
  %v1939 = vsel %vm296, %v1917, 0.0
  %1940 = vadd.xlane.f32.xlu0 %v1939
  %v1941 = vpop.xlane.xlu0 %1940
  %v1942 = vrcp.pop %v1920
  %v1943 = vrcp.pop %v1923
  %v1944 = vrcp.pop %v1926
  %v1945 = vrcp.pop %v1929
  %v1946 = vrcp.pop %v1932
  %v1947 = vrcp.pop %v1935
  %v1948 = vrcp.pop %v1938
  %v1949 = vrcp.pop %v1941
  %v1950 = vmul.f32 %v1903, %v1942
  %v1951 = vmul.f32 %v1905, %v1943
  %v1952 = vmul.f32 %v1907, %v1944
  %v1953 = vmul.f32 %v1909, %v1945
  %v1954 = vmul.f32 %v1911, %v1946
  %v1955 = vmul.f32 %v1913, %v1947
  %v1956 = vmul.f32 %v1915, %v1948
  %v1957 = vmul.f32 %v1917, %v1949
  %v1958 = vpack.c.bf16 %v1951, %v1950
  %v1959 = vpack.c.bf16 %v1953, %v1952
  %v1960 = vpack.c.bf16 %v1955, %v1954
  %v1961 = vpack.c.bf16 %v1957, %v1956
  %v1962 = vpack.c.bf16 %v1670, %v1667
  %v1963 = vpack.c.bf16 %v1678, %v1675
  %v1964 = vpack.c.bf16 %v1686, %v1683
  %v1965 = vpack.c.bf16 %v1694, %v1691
  %v1966 = vld [vmem:[%s11] sm:$0x1]
  %v1968 = vlaneseq
  %v1969 = vshrl.u32 %v1968, 7
  %v1970 = vsub.s32 0, %v1969
  %v1971 = vrot.slane %v1966, %v1970
  %v1974 = vsel %vm296, %v1958, 0
  %v1977 = vsel %vm296, %v1959, 0
  %v1980 = vsel %vm296, %v1960, 0
  %v1983 = vsel %vm296, %v1961, 0
  %1985 = vmatprep.subr.bf16.mxu0 0
  %1986 = vmatpush1.bf16.msra.mxu0 %v1962
  %1987 = vmatprep.subr.bf16.mxu0 0
  %1988 = vmatpush1.bf16.msra.mxu0 %v1963
  %1989 = vmatprep.subr.bf16.mxu0 0
  %1990 = vmatpush1.bf16.msra.mxu0 %v1964
  %1991 = vmatprep.subr.bf16.mxu0 0
  %1992 = vmatpush1.bf16.msra.mxu0 %v1965
  %1993 = vmatprep.subr.bf16.mxu0 0
  %1994 = vmatpush1.bf16.msra.mxu0 0
  %1995 = vmatprep.subr.bf16.mxu0 0
  %1996 = vmatpush1.bf16.msra.mxu0 0
  %1997 = vmatprep.subr.bf16.mxu0 0
  %1998 = vmatpush1.bf16.msra.mxu0 0
  %1999 = vmatprep.subr.bf16.mxu0 0
  %2000 = vmatpush1.bf16.msra.mxu0 0
  %2001 = vmatprep.subr.bf16.mxu0 0
  %2002 = vmatpush1.bf16.msra.mxu0 0
  %2003 = vmatprep.subr.bf16.mxu0 0
  %2004 = vmatpush1.bf16.msra.mxu0 0
  %2005 = vmatprep.subr.bf16.mxu0 0
  %2006 = vmatpush1.bf16.msra.mxu0 0
  %2007 = vmatprep.subr.bf16.mxu0 0
  %2008 = vmatpush1.bf16.msra.mxu0 0
  %2009 = vmatprep.subr.bf16.mxu0 0
  %2010 = vmatpush1.bf16.msra.mxu0 0
  %2011 = vmatprep.subr.bf16.mxu0 0
  %2012 = vmatpush1.bf16.msra.mxu0 0
  %2013 = vmatprep.subr.bf16.mxu0 0
  %2014 = vmatpush1.bf16.msra.mxu0 0
  %2015 = vmatprep.subr.bf16.mxu0 0
  %2016 = vmatpush1.bf16.msra.mxu0 0
  %2017 = vmatprep.mubr.bf16.mxu0 0
  %2018 = vmatmul.mubr.bf16.gmra.mrb[0].mxu0 %v1974
  %v2019 = vpop.f32.mrb[0].mxu0
  %v2020 = vadd.f32 %v1971, %v2019
  %v2021 = vpop.f32.mrb[0].mxu0
  %v2022 = vpop.f32.mrb[0].mxu0
  %v2023 = vadd.f32 %v1971, %v2022
  %v2024 = vpop.f32.mrb[0].mxu0
  %2025 = vmatprep.mubr.bf16.mxu0 0
  %2026 = vmatmul.mubr.bf16.gmra.mrb[0].mxu0 %v1977
  %v2027 = vpop.f32.mrb[0].mxu0
  %v2028 = vadd.f32 %v1971, %v2027
  %v2029 = vpop.f32.mrb[0].mxu0
  %v2030 = vpop.f32.mrb[0].mxu0
  %v2031 = vadd.f32 %v1971, %v2030
  %v2032 = vpop.f32.mrb[0].mxu0
  %2033 = vmatprep.mubr.bf16.mxu0 0
  %2034 = vmatmul.mubr.bf16.gmra.mrb[0].mxu0 %v1980
  %v2035 = vpop.f32.mrb[0].mxu0
  %v2036 = vadd.f32 %v1971, %v2035
  %v2037 = vpop.f32.mrb[0].mxu0
  %v2038 = vpop.f32.mrb[0].mxu0
  %v2039 = vadd.f32 %v1971, %v2038
  %v2040 = vpop.f32.mrb[0].mxu0
  %2041 = vmatprep.mubr.bf16.mxu0 0
  %2042 = vmatmul.mubr.bf16.gmra.mrb[0].mxu0 %v1983
  %v2043 = vpop.f32.mrb[0].mxu0
  %v2044 = vadd.f32 %v1971, %v2043
  %v2045 = vpop.f32.mrb[0].mxu0
  %v2046 = vpop.f32.mrb[0].mxu0
  %v2047 = vadd.f32 %v1971, %v2046
  %v2048 = vpop.f32.mrb[0].mxu0
  %2049 = vdwg.mxu0
  %v2050 = vld [vmem:[%s12] sm:$0x1]
  %v2051 = vld [vmem:[%s13] sm:$0x1]
  %v2052 = vsel %vm74, %v2020, 0.0
  %2053 = vadd.xlane.f32.xlu0 %v2052
  %v2054 = vpop.xlane.xlu0 %2053
  %v2055 = vsel %vm74, %v2023, 0.0
  %2056 = vadd.xlane.f32.xlu0 %v2055
  %v2057 = vpop.xlane.xlu0 %2056
  %v2058 = vsel %vm74, %v2028, 0.0
  %2059 = vadd.xlane.f32.xlu0 %v2058
  %v2060 = vpop.xlane.xlu0 %2059
  %v2061 = vsel %vm74, %v2031, 0.0
  %2062 = vadd.xlane.f32.xlu0 %v2061
  %v2063 = vpop.xlane.xlu0 %2062
  %v2064 = vsel %vm74, %v2036, 0.0
  %2065 = vadd.xlane.f32.xlu0 %v2064
  %v2066 = vpop.xlane.xlu0 %2065
  %v2067 = vsel %vm74, %v2039, 0.0
  %2068 = vadd.xlane.f32.xlu0 %v2067
  %v2069 = vpop.xlane.xlu0 %2068
  %v2070 = vsel %vm74, %v2044, 0.0
  %2071 = vadd.xlane.f32.xlu0 %v2070
  %v2072 = vpop.xlane.xlu0 %2071
  %v2073 = vsel %vm74, %v2047, 0.0
  %2074 = vadd.xlane.f32.xlu0 %v2073
  %v2075 = vpop.xlane.xlu0 %2074
  %v2076 = vrcp.pop 32.0
  %v2077 = vmul.f32 %v2054, %v2076
  %v2078 = vmul.f32 %v2057, %v2076
  %v2079 = vmul.f32 %v2060, %v2076
  %v2080 = vmul.f32 %v2063, %v2076
  %v2081 = vmul.f32 %v2066, %v2076
  %v2082 = vmul.f32 %v2069, %v2076
  %v2083 = vmul.f32 %v2072, %v2076
  %v2084 = vmul.f32 %v2075, %v2076
  %v2085 = vsub.f32 %v2020, %v2077
  %v2086 = vsub.f32 %v2023, %v2078
  %v2087 = vsub.f32 %v2028, %v2079
  %v2088 = vsub.f32 %v2031, %v2080
  %v2089 = vsub.f32 %v2036, %v2081
  %v2090 = vsub.f32 %v2039, %v2082
  %v2091 = vsub.f32 %v2044, %v2083
  %v2092 = vsub.f32 %v2047, %v2084
  %v2093 = vmul.f32 %v2085, %v2085
  %v2094 = vmul.f32 %v2086, %v2086
  %v2095 = vmul.f32 %v2087, %v2087
  %v2096 = vmul.f32 %v2088, %v2088
  %v2097 = vmul.f32 %v2089, %v2089
  %v2098 = vmul.f32 %v2090, %v2090
  %v2099 = vmul.f32 %v2091, %v2091
  %v2100 = vmul.f32 %v2092, %v2092
  %v2101 = vsel %vm74, %v2093, 0.0
  %2102 = vadd.xlane.f32.xlu0 %v2101
  %v2103 = vpop.xlane.xlu0 %2102
  %v2104 = vsel %vm74, %v2094, 0.0
  %2105 = vadd.xlane.f32.xlu0 %v2104
  %v2106 = vpop.xlane.xlu0 %2105
  %v2107 = vsel %vm74, %v2095, 0.0
  %2108 = vadd.xlane.f32.xlu0 %v2107
  %v2109 = vpop.xlane.xlu0 %2108
  %v2110 = vsel %vm74, %v2096, 0.0
  %2111 = vadd.xlane.f32.xlu0 %v2110
  %v2112 = vpop.xlane.xlu0 %2111
  %v2113 = vsel %vm74, %v2097, 0.0
  %2114 = vadd.xlane.f32.xlu0 %v2113
  %v2115 = vpop.xlane.xlu0 %2114
  %v2116 = vsel %vm74, %v2098, 0.0
  %2117 = vadd.xlane.f32.xlu0 %v2116
  %v2118 = vpop.xlane.xlu0 %2117
  %v2119 = vsel %vm74, %v2099, 0.0
  %2120 = vadd.xlane.f32.xlu0 %v2119
  %v2121 = vpop.xlane.xlu0 %2120
  %v2122 = vsel %vm74, %v2100, 0.0
  %2123 = vadd.xlane.f32.xlu0 %v2122
  %v2124 = vpop.xlane.xlu0 %2123
  %v2125 = vmul.f32 %v2103, %v2076
  %v2126 = vmul.f32 %v2106, %v2076
  %v2127 = vmul.f32 %v2109, %v2076
  %v2128 = vmul.f32 %v2112, %v2076
  %v2129 = vmul.f32 %v2115, %v2076
  %v2130 = vmul.f32 %v2118, %v2076
  %v2131 = vmul.f32 %v2121, %v2076
  %v2132 = vmul.f32 %v2124, %v2076
  %v2133 = vadd.f32 %v2125, 1e-05
  %v2134 = vadd.f32 %v2126, 1e-05
  %v2135 = vadd.f32 %v2127, 1e-05
  %v2136 = vadd.f32 %v2128, 1e-05
  %v2137 = vadd.f32 %v2129, 1e-05
  %v2138 = vadd.f32 %v2130, 1e-05
  %v2139 = vadd.f32 %v2131, 1e-05
  %v2140 = vadd.f32 %v2132, 1e-05
  %v2141 = vrsqrt.pop %v2133
  %v2142 = vrsqrt.pop %v2134
  %v2143 = vrsqrt.pop %v2135
  %v2144 = vrsqrt.pop %v2136
  %v2145 = vrsqrt.pop %v2137
  %v2146 = vrsqrt.pop %v2138
  %v2147 = vrsqrt.pop %v2139
  %v2148 = vrsqrt.pop %v2140
  %v2149 = vmul.f32 %v2085, %v2141
  %v2150 = vmul.f32 %v2086, %v2142
  %v2151 = vmul.f32 %v2087, %v2143
  %v2152 = vmul.f32 %v2088, %v2144
  %v2153 = vmul.f32 %v2089, %v2145
  %v2154 = vmul.f32 %v2090, %v2146
  %v2155 = vmul.f32 %v2091, %v2147
  %v2156 = vmul.f32 %v2092, %v2148
  %v2158 = vlaneseq
  %v2159 = vshrl.u32 %v2158, 7
  %v2160 = vsub.s32 0, %v2159
  %v2161 = vrot.slane %v2050, %v2160
  %v2163 = vmul.f32 %v2149, %v2161
  %v2164 = vmul.f32 %v2150, %v2161
  %v2165 = vmul.f32 %v2151, %v2161
  %v2166 = vmul.f32 %v2152, %v2161
  %v2167 = vmul.f32 %v2153, %v2161
  %v2168 = vmul.f32 %v2154, %v2161
  %v2169 = vmul.f32 %v2155, %v2161
  %v2170 = vmul.f32 %v2156, %v2161
  %v2172 = vlaneseq
  %v2173 = vshrl.u32 %v2172, 7
  %v2174 = vsub.s32 0, %v2173
  %v2175 = vrot.slane %v2051, %v2174
  %v2177 = vadd.f32 %v2163, %v2175
  %v2178 = vadd.f32 %v2164, %v2175
  %v2179 = vadd.f32 %v2165, %v2175
  %v2180 = vadd.f32 %v2166, %v2175
  %v2181 = vadd.f32 %v2167, %v2175
  %v2182 = vadd.f32 %v2168, %v2175
  %v2183 = vadd.f32 %v2169, %v2175
  %v2184 = vadd.f32 %v2170, %v2175
  %2185 = vst.msk [vmem:[%s14] sm:$0xff] %vm74, %v2177
  %2186 = vst.msk [vmem:[%s14 + $0x8] sm:$0xff] %vm74, %v2178
  %2187 = vst.msk [vmem:[%s14 + $0x10] sm:$0xff] %vm74, %v2179
  %2188 = vst.msk [vmem:[%s14 + $0x18] sm:$0xff] %vm74, %v2180
  %2189 = vst.msk [vmem:[%s14 + $0x20] sm:$0xff] %vm74, %v2181
  %2190 = vst.msk [vmem:[%s14 + $0x28] sm:$0xff] %vm74, %v2182
  %2191 = vst.msk [vmem:[%s14 + $0x30] sm:$0xff] %vm74, %v2183
  %2192 = vst.msk [vmem:[%s14 + $0x38] sm:$0xff] %vm74, %v2184
  // Predicated region
  $region58: #{tpu_custom_call.1} parent=0 // pred_check
    _
  $region59: #{tpu_custom_call.1} parent=0 // pred_check_branch
    %2194 = sbr.rel (0) target = $region61
  $region60: #{tpu_custom_call.1} parent=0 // pred_region
    _
  $region61: #{tpu_custom_call.1} parent=0 // pred_fallthru
    _
  // Predicated region
  $region62: #{tpu_custom_call.1} parent=0 // pred_check
    _
  $region63: #{tpu_custom_call.1} parent=0 // pred_check_branch
    %2196 = sbr.rel (0) target = $region65
  $region64: #{tpu_custom_call.1} parent=0 // pred_region
    _
  $region65: #{tpu_custom_call.1} parent=0 // pred_fallthru
    _

</llo_original>
